<compile_context>
chip_gen: v7x
topology: tpu7x:2x2x1
jax: 0.10.0
libtpu: 0.0.40
codegen_flags: <defaults>
</compile_context>

<pallas_src>
import functools

import jax
import jax.numpy as jnp
from jax.experimental import pallas as pl
from jax.experimental.pallas import tpu as pltpu

EPS = 1e-5  # PyTorch BatchNorm1d default eps


def _fe_kernel(x_ref, s_ref, w1_ref, b1_ref, w2_ref, b2_ref, w3_ref, b3_ref,
               o_ref, *, L, Lp, L2, L3, LW):
    f32 = jnp.float32
    bf16 = jnp.bfloat16

    def shift_lanes(h, d):
        """t[:, l] = h[:, l + d] with zero fill at the ends (length is on lanes)."""
        if d == 0:
            return h
        z = jnp.zeros((h.shape[0], abs(d)), h.dtype)
        if d > 0:
            return jnp.concatenate([h[:, d:], z], axis=1)
        return jnp.concatenate([z, h[:, :d]], axis=1)

    def conv_bn_relu(h, lin, pad, w_ref, b_ref):
        """Conv1d(k=3, s=1, padding=pad) + folded BN + ReLU.

        h: (Cin, LW) f32 value with valid lanes [0, lin) and zeros elsewhere.
        Returns (Cout, LW) f32 with valid lanes [0, lin + 2*pad - 2), zeros elsewhere.
        """
        lout = lin + 2 * pad - 2
        acc = None
        for k in range(3):                                      # static unroll over taps
            # tap[:, l] = h[:, l + k - pad]; zero-fill matches the conv zero padding
            tap = shift_lanes(h, k - pad).astype(bf16)
            y = jnp.dot(w_ref[k], tap, preferred_element_type=f32)   # (Cout, LW)
            acc = y if acc is None else acc + y
        y = jnp.maximum(acc + b_ref[...], 0.0)                  # bias + ReLU in f32
        lane = jax.lax.broadcasted_iota(jnp.int32, y.shape, 1)
        return jnp.where(lane < lout, y, 0.0)                   # keep zeros beyond lout

    x = x_ref[...].astype(f32)                                  # (C_in, LW)

    # ---- conv_block1: Conv1d(pad=1) + folded BN + ReLU
    h1 = conv_bn_relu(x, L, 1, w1_ref, b1_ref)                  # (H, LW), valid [0, L)

    # ---- MaxPool1d(kernel=2, stride=2, padding=1):
    #      pooled[:, o] = max(h1[:, 2o-1], h1[:, 2o]).
    # Zero padding is equivalent to PyTorch's -inf padding because h1 >= 0 (post-ReLU).
    left = shift_lanes(h1, -1)                                  # h1[:, l-1], zero at l=0
    m = jnp.maximum(h1, left)                                   # m[:, 2o] == pooled[:, o]
    # stride-2 even-lane gather via a precomputed 0/1 matrix (pure data movement)
    pooled = jnp.dot(m, s_ref[...], preferred_element_type=f32)  # (H, LW), valid [0, Lp)
    # Dropout(0.35) is identity in eval/inference mode.

    # ---- conv_block2 / conv_block3: Conv1d(pad=2) + folded BN + ReLU
    h2 = conv_bn_relu(pooled, Lp, 2, w2_ref, b2_ref)            # (2H, LW), valid [0, L2)
    h3 = conv_bn_relu(h2, L2, 2, w3_ref, b3_ref)                # (E, LW),  valid [0, L3)

    o_ref[...] = h3.astype(o_ref.dtype)                         # lane-dense (E, LW) store


def feature_extractor_1dcnn_tiny(x_ncl, params):
    """x_ncl: (B, C_in, L) like PyTorch NCL. Returns (B, E, L_out) like the module."""
    (w1, g1, b1, m1, v1,
     w2, g2, b2, m2, v2,
     w3, g3, b3, m3, v3) = params
    B, C_in, L = x_ncl.shape
    H = w1.shape[2]
    E = w3.shape[2]
    Lp = L // 2 + 1          # length after MaxPool1d(kernel=2, stride=2, padding=1)
    L2 = Lp + 2              # length after conv2 (k=3, pad=2)
    L3 = L2 + 2              # length after conv3 (k=3, pad=2)
    # One lane-dense working width for every layer (>= L+1 so the pool's right
    # zero-pad lane always exists even when L is a multiple of 128).
    LW = pl.cdiv(max(L + 1, L3), 128) * 128
    # TODO(synk): for very large L, additionally tile the length axis with a
    # 2-lane halo instead of keeping the full LW per grid step.

    def fold(w, g, b, m, v):
        # Fold eval-mode BN into the conv: s = g/sqrt(v+eps), w' = w*s, b' = b - m*s.
        s = (g / jnp.sqrt(v + EPS)).reshape(-1)                      # (Cout,)
        wf = jnp.transpose(w * s[None, None, :], (0, 2, 1))          # (3, Cout, Cin)
        bf = (b.reshape(-1) - m.reshape(-1) * s).reshape(-1, 1)      # (Cout, 1)
        return wf.astype(jnp.bfloat16), bf.astype(jnp.float32)       # bf16 MXU operands

    w1f, b1f = fold(w1, g1, b1, m1, v1)
    w2f, b2f = fold(w2, g2, b2, m2, v2)
    w3f, b3f = fold(w3, g3, b3, m3, v3)

    # NCL input already has length last -> just zero-pad length up to LW lanes.
    x_pad = jnp.pad(x_ncl.astype(jnp.float32), ((0, 0), (0, 0), (0, LW - L)))

    # Even-lane gather matrix for the pool's stride-2 downsample, hoisted out of
    # the kernel (depends only on static shapes): s_even[2o, o] = 1 for o < Lp.
    l_idx = jnp.arange(LW)[:, None]
    o_idx = jnp.arange(LW)[None, :]
    s_even = ((l_idx == 2 * o_idx) & (o_idx < Lp)).astype(jnp.float32)   # (LW, LW)

    def full_spec(a):
        nd = a.ndim
        return pl.BlockSpec(a.shape, lambda b, _nd=nd: (0,) * _nd)

    kernel = functools.partial(_fe_kernel, L=L, Lp=Lp, L2=L2, L3=L3, LW=LW)

    flops = B * 2 * (3 * C_in * H * L
                     + H * LW * LW                       # pool gather matmul
                     + 3 * H * (2 * H) * L2
                     + 3 * (2 * H) * E * L3)
    bytes_accessed = (x_pad.size * 4 + B * E * LW * 4 + s_even.size * 4
                      + (w1f.size + w2f.size + w3f.size) * 2
                      + (b1f.size + b2f.size + b3f.size) * 4)

    out = pl.pallas_call(
        kernel,
        out_shape=jax.ShapeDtypeStruct((B, E, LW), jnp.float32),
        grid_spec=pltpu.PrefetchScalarGridSpec(
            num_scalar_prefetch=0,
            grid=(B,),                                   # >1 step: megacore + pipelining
            in_specs=[pl.BlockSpec((None, C_in, LW), lambda b: (b, 0, 0)),
                      full_spec(s_even),
                      full_spec(w1f), full_spec(b1f),
                      full_spec(w2f), full_spec(b2f),
                      full_spec(w3f), full_spec(b3f)],
            out_specs=pl.BlockSpec((None, E, LW), lambda b: (b, 0, 0))),
        compiler_params=pltpu.CompilerParams(
            dimension_semantics=("parallel",),           # batch shards across v7x TCs
            vmem_limit_bytes=32 * 1024 * 1024),
        cost_estimate=pl.CostEstimate(flops=int(flops), transcendentals=0,
                                      bytes_accessed=int(bytes_accessed)),
    )(x_pad, s_even, w1f, b1f, w2f, b2f, w3f, b3f)

    return out[:, :, :L3]                                # NCL: (B, E, L3)


def _reference(x_ncl, params):
    """Pure-JAX f32 reference with identical semantics (sanity check)."""
    (w1, g1, b1, m1, v1,
     w2, g2, b2, m2, v2,
     w3, g3, b3, m3, v3) = params
    x = jnp.transpose(x_ncl, (0, 2, 1)).astype(jnp.float32)  # (B, L, C)

    def conv(h, w, pad):
        hp = jnp.pad(h, ((0, 0), (pad, pad), (0, 0)))
        out_len = h.shape[1] + 2 * pad - 3 + 1
        return sum(jnp.einsum('blc,cd->bld', hp[:, k:k + out_len, :], w[k])
                   for k in range(3))

    def bn_relu(h, g, b, m, v):
        return jnp.maximum((h - m) * (g / jnp.sqrt(v + EPS)) + b, 0.0)

    h = bn_relu(conv(x, w1, 1), g1, b1, m1, v1)
    hp = jnp.pad(h, ((0, 0), (1, 1), (0, 0)), constant_values=-jnp.inf)
    Lp = h.shape[1] // 2 + 1
    h = jnp.maximum(hp[:, 0:2 * Lp:2, :], hp[:, 1:2 * Lp:2, :])
    h = bn_relu(conv(h, w2, 2), g2, b2, m2, v2)
    h = bn_relu(conv(h, w3, 2), g3, b3, m3, v3)
    return jnp.transpose(h, (0, 2, 1))


def _init_params(key, c_in, hidden, emb):
    ks = jax.random.split(key, 15)
    f32 = jnp.float32

    def conv_w(k, cin, cout):
        # stored as (kernel_tap, in_channels, out_channels)
        return jax.random.normal(k, (3, cin, cout), f32) / jnp.sqrt(3.0 * cin)

    def bn(kg, kb, km, kv, c):
        g = 0.5 + jax.random.uniform(kg, (1, c), f32)          # gamma
        b = 0.1 * jax.random.normal(kb, (1, c), f32)           # beta
        m = 0.1 * jax.random.normal(km, (1, c), f32)           # running_mean
        v = 0.5 + jax.random.uniform(kv, (1, c), f32)          # running_var > 0
        return g, b, m, v

    w1 = conv_w(ks[0], c_in, hidden)
    g1, b1, m1, v1 = bn(ks[1], ks[2], ks[3], ks[4], hidden)
    w2 = conv_w(ks[5], hidden, 2 * hidden)
    g2, b2, m2, v2 = bn(ks[6], ks[7], ks[8], ks[9], 2 * hidden)
    w3 = conv_w(ks[10], 2 * hidden, emb)
    g3, b3, m3, v3 = bn(ks[11], ks[12], ks[13], ks[14], emb)
    return (w1, g1, b1, m1, v1, w2, g2, b2, m2, v2, w3, g3, b3, m3, v3)


if __name__ == "__main__":
    B, C_IN, L = 2, 4, 16
    HIDDEN, EMB = 16, 32

    key = jax.random.PRNGKey(0)
    kx, kp = jax.random.split(key)
    x = jax.random.normal(kx, (B, C_IN, L), jnp.float32)      # PyTorch NCL input
    params = _init_params(kp, C_IN, HIDDEN, EMB)

    out = feature_extractor_1dcnn_tiny(x, params)
    out = jax.block_until_ready(out)

    ref = _reference(x, params)
    assert out.shape == (B, EMB, (L // 2 + 1) + 4), out.shape
    # Kernel uses bf16 MXU operands (f32 accumulation); reference is pure f32,
    # so allow a slightly looser tolerance than an all-f32 comparison would.
    err = float(jnp.max(jnp.abs(out - ref)))
    assert jnp.allclose(out, ref, rtol=5e-2, atol=5e-2), err

    print("KERNEL_OK")
</pallas_src>

<mosaic_0001>
module attributes {stable_mosaic.version = 11 : i64} {
  func.func @_fe_kernel(%arg0: i32, %arg1: memref<1x4x128xf32, #tpu.memory_space<vmem>>, %arg2: memref<128x128xf32, #tpu.memory_space<vmem>>, %arg3: memref<3x16x4xbf16, #tpu.memory_space<vmem>>, %arg4: memref<16x1xf32, #tpu.memory_space<vmem>>, %arg5: memref<3x32x16xbf16, #tpu.memory_space<vmem>>, %arg6: memref<32x1xf32, #tpu.memory_space<vmem>>, %arg7: memref<3x32x32xbf16, #tpu.memory_space<vmem>>, %arg8: memref<32x1xf32, #tpu.memory_space<vmem>>, %arg9: memref<1x32x128xf32, #tpu.memory_space<vmem>>) attributes {dimension_semantics = [#tpu.dimension_semantics<parallel>], iteration_bounds = array<i64: 2>, scalar_prefetch = 0 : i64, scratch_operands = 0 : i64, tpu.core_type = #tpu.core_type<tc>, window_params = [{transform_indices = @transform_0, window_bounds = array<i64: 1, 4, 128>}, {pipeline_mode = #tpu.pipeline_mode<synchronous>, transform_indices = @transform_1, window_bounds = array<i64: 128, 128>}, {pipeline_mode = #tpu.pipeline_mode<synchronous>, transform_indices = @transform_2, window_bounds = array<i64: 3, 16, 4>}, {pipeline_mode = #tpu.pipeline_mode<synchronous>, transform_indices = @transform_3, window_bounds = array<i64: 16, 1>}, {pipeline_mode = #tpu.pipeline_mode<synchronous>, transform_indices = @transform_4, window_bounds = array<i64: 3, 32, 16>}, {pipeline_mode = #tpu.pipeline_mode<synchronous>, transform_indices = @transform_5, window_bounds = array<i64: 32, 1>}, {pipeline_mode = #tpu.pipeline_mode<synchronous>, transform_indices = @transform_6, window_bounds = array<i64: 3, 32, 32>}, {pipeline_mode = #tpu.pipeline_mode<synchronous>, transform_indices = @transform_7, window_bounds = array<i64: 32, 1>}, {transform_indices = @transform_8, window_bounds = array<i64: 1, 32, 128>}]} {
    %c0 = arith.constant 0 : index
    %c0_0 = arith.constant 0 : index
    %c0_1 = arith.constant 0 : index
    %0 = vector.load %arg1[%c0, %c0_0, %c0_1] : memref<1x4x128xf32, #tpu.memory_space<vmem>>, vector<1x4x128xf32>
    %1 = vector.shape_cast %0 : vector<1x4x128xf32> to vector<4x128xf32>
    %cst = arith.constant 0.000000e+00 : f32
    %2 = vector.broadcast %cst : f32 to vector<4x1xf32>
    %3 = vector.extract_strided_slice %1 {offsets = [0, 0], sizes = [4, 127], strides = [1, 1]} : vector<4x128xf32> to vector<4x127xf32>
    %4 = tpu.concatenate %2, %3 in 1 : vector<4x1xf32>, vector<4x127xf32> -> vector<4x128xf32>
    %5 = arith.truncf %4 : vector<4x128xf32> to vector<4x128xbf16>
    %c0_2 = arith.constant 0 : index
    %c0_3 = arith.constant 0 : index
    %c0_4 = arith.constant 0 : index
    %6 = vector.load %arg3[%c0_2, %c0_3, %c0_4] : memref<3x16x4xbf16, #tpu.memory_space<vmem>>, vector<1x16x4xbf16>
    %7 = vector.shape_cast %6 : vector<1x16x4xbf16> to vector<16x4xbf16>
    %cst_5 = arith.constant dense<0.000000e+00> : vector<16x128xf32>
    %8 = tpu.matmul %7, %5, %cst_5 {dimension_numbers = #tpu.dot_dimension_numbers<[1], [0], [0], [1], [0, 0, 1, 1], [], []>} : vector<16x4xbf16>, vector<4x128xbf16>, vector<16x128xf32> -> vector<16x128xf32>
    %9 = arith.truncf %1 : vector<4x128xf32> to vector<4x128xbf16>
    %c1 = arith.constant 1 : index
    %c0_6 = arith.constant 0 : index
    %c0_7 = arith.constant 0 : index
    %10 = vector.load %arg3[%c1, %c0_6, %c0_7] : memref<3x16x4xbf16, #tpu.memory_space<vmem>>, vector<1x16x4xbf16>
    %11 = vector.shape_cast %10 : vector<1x16x4xbf16> to vector<16x4xbf16>
    %cst_8 = arith.constant dense<0.000000e+00> : vector<16x128xf32>
    %12 = tpu.matmul %11, %9, %cst_8 {dimension_numbers = #tpu.dot_dimension_numbers<[1], [0], [0], [1], [0, 0, 1, 1], [], []>} : vector<16x4xbf16>, vector<4x128xbf16>, vector<16x128xf32> -> vector<16x128xf32>
    %13 = arith.addf %8, %12 : vector<16x128xf32>
    %cst_9 = arith.constant 0.000000e+00 : f32
    %14 = vector.broadcast %cst_9 : f32 to vector<4x1xf32>
    %15 = vector.extract_strided_slice %1 {offsets = [0, 1], sizes = [4, 127], strides = [1, 1]} : vector<4x128xf32> to vector<4x127xf32>
    %16 = tpu.concatenate %15, %14 in 1 : vector<4x127xf32>, vector<4x1xf32> -> vector<4x128xf32>
    %17 = arith.truncf %16 : vector<4x128xf32> to vector<4x128xbf16>
    %c2 = arith.constant 2 : index
    %c0_10 = arith.constant 0 : index
    %c0_11 = arith.constant 0 : index
    %18 = vector.load %arg3[%c2, %c0_10, %c0_11] : memref<3x16x4xbf16, #tpu.memory_space<vmem>>, vector<1x16x4xbf16>
    %19 = vector.shape_cast %18 : vector<1x16x4xbf16> to vector<16x4xbf16>
    %cst_12 = arith.constant dense<0.000000e+00> : vector<16x128xf32>
    %20 = tpu.matmul %19, %17, %cst_12 {dimension_numbers = #tpu.dot_dimension_numbers<[1], [0], [0], [1], [0, 0, 1, 1], [], []>} : vector<16x4xbf16>, vector<4x128xbf16>, vector<16x128xf32> -> vector<16x128xf32>
    %21 = arith.addf %13, %20 : vector<16x128xf32>
    %c0_13 = arith.constant 0 : index
    %c0_14 = arith.constant 0 : index
    %22 = vector.load %arg4[%c0_13, %c0_14] : memref<16x1xf32, #tpu.memory_space<vmem>>, vector<16x1xf32>
    %23 = vector.broadcast %22 : vector<16x1xf32> to vector<16x128xf32>
    %24 = arith.addf %21, %23 : vector<16x128xf32>
    %cst_15 = arith.constant 0.000000e+00 : f32
    %25 = vector.broadcast %cst_15 : f32 to vector<16x128xf32>
    %26 = arith.maximumf %24, %25 : vector<16x128xf32>
    %27 = tpu.iota {dimensions = array<i32: 1>} : vector<16x128xi32>
    %c16_i32 = arith.constant 16 : i32
    %28 = vector.broadcast %c16_i32 : i32 to vector<16x128xi32>
    %29 = arith.cmpi slt, %27, %28 : vector<16x128xi32>
    %cst_16 = arith.constant 0.000000e+00 : f32
    %30 = vector.broadcast %cst_16 : f32 to vector<16x128xf32>
    %31 = arith.select %29, %26, %30 : vector<16x128xi1>, vector<16x128xf32>
    %cst_17 = arith.constant 0.000000e+00 : f32
    %32 = vector.broadcast %cst_17 : f32 to vector<16x1xf32>
    %33 = vector.extract_strided_slice %31 {offsets = [0, 0], sizes = [16, 127], strides = [1, 1]} : vector<16x128xf32> to vector<16x127xf32>
    %34 = tpu.concatenate %32, %33 in 1 : vector<16x1xf32>, vector<16x127xf32> -> vector<16x128xf32>
    %35 = arith.maximumf %31, %34 : vector<16x128xf32>
    %c0_18 = arith.constant 0 : index
    %c0_19 = arith.constant 0 : index
    %36 = vector.load %arg2[%c0_18, %c0_19] : memref<128x128xf32, #tpu.memory_space<vmem>>, vector<128x128xf32>
    %cst_20 = arith.constant dense<0.000000e+00> : vector<16x128xf32>
    %37 = tpu.matmul %35, %36, %cst_20 {dimension_numbers = #tpu.dot_dimension_numbers<[1], [0], [0], [1], [0, 0, 1, 1], [], []>} : vector<16x128xf32>, vector<128x128xf32>, vector<16x128xf32> -> vector<16x128xf32>
    %cst_21 = arith.constant 0.000000e+00 : f32
    %38 = vector.broadcast %cst_21 : f32 to vector<16x2xf32>
    %39 = vector.extract_strided_slice %37 {offsets = [0, 0], sizes = [16, 126], strides = [1, 1]} : vector<16x128xf32> to vector<16x126xf32>
    %40 = tpu.concatenate %38, %39 in 1 : vector<16x2xf32>, vector<16x126xf32> -> vector<16x128xf32>
    %41 = arith.truncf %40 : vector<16x128xf32> to vector<16x128xbf16>
    %c0_22 = arith.constant 0 : index
    %c0_23 = arith.constant 0 : index
    %c0_24 = arith.constant 0 : index
    %42 = vector.load %arg5[%c0_22, %c0_23, %c0_24] : memref<3x32x16xbf16, #tpu.memory_space<vmem>>, vector<1x32x16xbf16>
    %43 = vector.shape_cast %42 : vector<1x32x16xbf16> to vector<32x16xbf16>
    %cst_25 = arith.constant dense<0.000000e+00> : vector<32x128xf32>
    %44 = tpu.matmul %43, %41, %cst_25 {dimension_numbers = #tpu.dot_dimension_numbers<[1], [0], [0], [1], [0, 0, 1, 1], [], []>} : vector<32x16xbf16>, vector<16x128xbf16>, vector<32x128xf32> -> vector<32x128xf32>
    %cst_26 = arith.constant 0.000000e+00 : f32
    %45 = vector.broadcast %cst_26 : f32 to vector<16x1xf32>
    %46 = vector.extract_strided_slice %37 {offsets = [0, 0], sizes = [16, 127], strides = [1, 1]} : vector<16x128xf32> to vector<16x127xf32>
    %47 = tpu.concatenate %45, %46 in 1 : vector<16x1xf32>, vector<16x127xf32> -> vector<16x128xf32>
    %48 = arith.truncf %47 : vector<16x128xf32> to vector<16x128xbf16>
    %c1_27 = arith.constant 1 : index
    %c0_28 = arith.constant 0 : index
    %c0_29 = arith.constant 0 : index
    %49 = vector.load %arg5[%c1_27, %c0_28, %c0_29] : memref<3x32x16xbf16, #tpu.memory_space<vmem>>, vector<1x32x16xbf16>
    %50 = vector.shape_cast %49 : vector<1x32x16xbf16> to vector<32x16xbf16>
    %cst_30 = arith.constant dense<0.000000e+00> : vector<32x128xf32>
    %51 = tpu.matmul %50, %48, %cst_30 {dimension_numbers = #tpu.dot_dimension_numbers<[1], [0], [0], [1], [0, 0, 1, 1], [], []>} : vector<32x16xbf16>, vector<16x128xbf16>, vector<32x128xf32> -> vector<32x128xf32>
    %52 = arith.addf %44, %51 : vector<32x128xf32>
    %53 = arith.truncf %37 : vector<16x128xf32> to vector<16x128xbf16>
    %c2_31 = arith.constant 2 : index
    %c0_32 = arith.constant 0 : index
    %c0_33 = arith.constant 0 : index
    %54 = vector.load %arg5[%c2_31, %c0_32, %c0_33] : memref<3x32x16xbf16, #tpu.memory_space<vmem>>, vector<1x32x16xbf16>
    %55 = vector.shape_cast %54 : vector<1x32x16xbf16> to vector<32x16xbf16>
    %cst_34 = arith.constant dense<0.000000e+00> : vector<32x128xf32>
    %56 = tpu.matmul %55, %53, %cst_34 {dimension_numbers = #tpu.dot_dimension_numbers<[1], [0], [0], [1], [0, 0, 1, 1], [], []>} : vector<32x16xbf16>, vector<16x128xbf16>, vector<32x128xf32> -> vector<32x128xf32>
    %57 = arith.addf %52, %56 : vector<32x128xf32>
    %c0_35 = arith.constant 0 : index
    %c0_36 = arith.constant 0 : index
    %58 = vector.load %arg6[%c0_35, %c0_36] : memref<32x1xf32, #tpu.memory_space<vmem>>, vector<32x1xf32>
    %59 = vector.broadcast %58 : vector<32x1xf32> to vector<32x128xf32>
    %60 = arith.addf %57, %59 : vector<32x128xf32>
    %cst_37 = arith.constant 0.000000e+00 : f32
    %61 = vector.broadcast %cst_37 : f32 to vector<32x128xf32>
    %62 = arith.maximumf %60, %61 : vector<32x128xf32>
    %63 = tpu.iota {dimensions = array<i32: 1>} : vector<32x128xi32>
    %c11_i32 = arith.constant 11 : i32
    %64 = vector.broadcast %c11_i32 : i32 to vector<32x128xi32>
    %65 = arith.cmpi slt, %63, %64 : vector<32x128xi32>
    %cst_38 = arith.constant 0.000000e+00 : f32
    %66 = vector.broadcast %cst_38 : f32 to vector<32x128xf32>
    %67 = arith.select %65, %62, %66 : vector<32x128xi1>, vector<32x128xf32>
    %cst_39 = arith.constant 0.000000e+00 : f32
    %68 = vector.broadcast %cst_39 : f32 to vector<32x2xf32>
    %69 = vector.extract_strided_slice %67 {offsets = [0, 0], sizes = [32, 126], strides = [1, 1]} : vector<32x128xf32> to vector<32x126xf32>
    %70 = tpu.concatenate %68, %69 in 1 : vector<32x2xf32>, vector<32x126xf32> -> vector<32x128xf32>
    %71 = arith.truncf %70 : vector<32x128xf32> to vector<32x128xbf16>
    %c0_40 = arith.constant 0 : index
    %c0_41 = arith.constant 0 : index
    %c0_42 = arith.constant 0 : index
    %72 = vector.load %arg7[%c0_40, %c0_41, %c0_42] : memref<3x32x32xbf16, #tpu.memory_space<vmem>>, vector<1x32x32xbf16>
    %73 = vector.shape_cast %72 : vector<1x32x32xbf16> to vector<32x32xbf16>
    %cst_43 = arith.constant dense<0.000000e+00> : vector<32x128xf32>
    %74 = tpu.matmul %73, %71, %cst_43 {dimension_numbers = #tpu.dot_dimension_numbers<[1], [0], [0], [1], [0, 0, 1, 1], [], []>} : vector<32x32xbf16>, vector<32x128xbf16>, vector<32x128xf32> -> vector<32x128xf32>
    %cst_44 = arith.constant 0.000000e+00 : f32
    %75 = vector.broadcast %cst_44 : f32 to vector<32x1xf32>
    %76 = vector.extract_strided_slice %67 {offsets = [0, 0], sizes = [32, 127], strides = [1, 1]} : vector<32x128xf32> to vector<32x127xf32>
    %77 = tpu.concatenate %75, %76 in 1 : vector<32x1xf32>, vector<32x127xf32> -> vector<32x128xf32>
    %78 = arith.truncf %77 : vector<32x128xf32> to vector<32x128xbf16>
    %c1_45 = arith.constant 1 : index
    %c0_46 = arith.constant 0 : index
    %c0_47 = arith.constant 0 : index
    %79 = vector.load %arg7[%c1_45, %c0_46, %c0_47] : memref<3x32x32xbf16, #tpu.memory_space<vmem>>, vector<1x32x32xbf16>
    %80 = vector.shape_cast %79 : vector<1x32x32xbf16> to vector<32x32xbf16>
    %cst_48 = arith.constant dense<0.000000e+00> : vector<32x128xf32>
    %81 = tpu.matmul %80, %78, %cst_48 {dimension_numbers = #tpu.dot_dimension_numbers<[1], [0], [0], [1], [0, 0, 1, 1], [], []>} : vector<32x32xbf16>, vector<32x128xbf16>, vector<32x128xf32> -> vector<32x128xf32>
    %82 = arith.addf %74, %81 : vector<32x128xf32>
    %83 = arith.truncf %67 : vector<32x128xf32> to vector<32x128xbf16>
    %c2_49 = arith.constant 2 : index
    %c0_50 = arith.constant 0 : index
    %c0_51 = arith.constant 0 : index
    %84 = vector.load %arg7[%c2_49, %c0_50, %c0_51] : memref<3x32x32xbf16, #tpu.memory_space<vmem>>, vector<1x32x32xbf16>
    %85 = vector.shape_cast %84 : vector<1x32x32xbf16> to vector<32x32xbf16>
    %cst_52 = arith.constant dense<0.000000e+00> : vector<32x128xf32>
    %86 = tpu.matmul %85, %83, %cst_52 {dimension_numbers = #tpu.dot_dimension_numbers<[1], [0], [0], [1], [0, 0, 1, 1], [], []>} : vector<32x32xbf16>, vector<32x128xbf16>, vector<32x128xf32> -> vector<32x128xf32>
    %87 = arith.addf %82, %86 : vector<32x128xf32>
    %c0_53 = arith.constant 0 : index
    %c0_54 = arith.constant 0 : index
    %88 = vector.load %arg8[%c0_53, %c0_54] : memref<32x1xf32, #tpu.memory_space<vmem>>, vector<32x1xf32>
    %89 = vector.broadcast %88 : vector<32x1xf32> to vector<32x128xf32>
    %90 = arith.addf %87, %89 : vector<32x128xf32>
    %cst_55 = arith.constant 0.000000e+00 : f32
    %91 = vector.broadcast %cst_55 : f32 to vector<32x128xf32>
    %92 = arith.maximumf %90, %91 : vector<32x128xf32>
    %93 = tpu.iota {dimensions = array<i32: 1>} : vector<32x128xi32>
    %c13_i32 = arith.constant 13 : i32
    %94 = vector.broadcast %c13_i32 : i32 to vector<32x128xi32>
    %95 = arith.cmpi slt, %93, %94 : vector<32x128xi32>
    %cst_56 = arith.constant 0.000000e+00 : f32
    %96 = vector.broadcast %cst_56 : f32 to vector<32x128xf32>
    %97 = arith.select %95, %92, %96 : vector<32x128xi1>, vector<32x128xf32>
    %c0_57 = arith.constant 0 : index
    %c0_58 = arith.constant 0 : index
    %c0_59 = arith.constant 0 : index
    %98 = vector.load %arg9[%c0_57, %c0_58, %c0_59] : memref<1x32x128xf32, #tpu.memory_space<vmem>>, vector<1x32x128xf32>
    %99 = vector.shape_cast %98 : vector<1x32x128xf32> to vector<32x128xf32>
    %100 = vector.shape_cast %97 : vector<32x128xf32> to vector<1x32x128xf32>
    tpu.vector_store %arg9[%c0_57, %c0_58, %c0_59], %100 {strides = array<i32>} : memref<1x32x128xf32, #tpu.memory_space<vmem>>, vector<1x32x128xf32>,
    return
  }
  func.func @transform_0(%arg0: i32) -> (i32, i32, i32) {
    %c0_i32 = arith.constant 0 : i32
    %c0_i32_0 = arith.constant 0 : i32
    %c0_i32_1 = arith.constant 0 : i32
    return %arg0, %c0_i32, %c0_i32_0 : i32, i32, i32
  }
  func.func @transform_1(%arg0: i32) -> (i32, i32) {
    %c0_i32 = arith.constant 0 : i32
    %c0_i32_0 = arith.constant 0 : i32
    %c0_i32_1 = arith.constant 0 : i32
    return %c0_i32, %c0_i32_0 : i32, i32
  }
  func.func @transform_2(%arg0: i32) -> (i32, i32, i32) {
    %c0_i32 = arith.constant 0 : i32
    %c0_i32_0 = arith.constant 0 : i32
    %c0_i32_1 = arith.constant 0 : i32
    %c0_i32_2 = arith.constant 0 : i32
    return %c0_i32, %c0_i32_0, %c0_i32_1 : i32, i32, i32
  }
  func.func @transform_3(%arg0: i32) -> (i32, i32) {
    %c0_i32 = arith.constant 0 : i32
    %c0_i32_0 = arith.constant 0 : i32
    %c0_i32_1 = arith.constant 0 : i32
    return %c0_i32, %c0_i32_0 : i32, i32
  }
  func.func @transform_4(%arg0: i32) -> (i32, i32, i32) {
    %c0_i32 = arith.constant 0 : i32
    %c0_i32_0 = arith.constant 0 : i32
    %c0_i32_1 = arith.constant 0 : i32
    %c0_i32_2 = arith.constant 0 : i32
    return %c0_i32, %c0_i32_0, %c0_i32_1 : i32, i32, i32
  }
  func.func @transform_5(%arg0: i32) -> (i32, i32) {
    %c0_i32 = arith.constant 0 : i32
    %c0_i32_0 = arith.constant 0 : i32
    %c0_i32_1 = arith.constant 0 : i32
    return %c0_i32, %c0_i32_0 : i32, i32
  }
  func.func @transform_6(%arg0: i32) -> (i32, i32, i32) {
    %c0_i32 = arith.constant 0 : i32
    %c0_i32_0 = arith.constant 0 : i32
    %c0_i32_1 = arith.constant 0 : i32
    %c0_i32_2 = arith.constant 0 : i32
    return %c0_i32, %c0_i32_0, %c0_i32_1 : i32, i32, i32
  }
  func.func @transform_7(%arg0: i32) -> (i32, i32) {
    %c0_i32 = arith.constant 0 : i32
    %c0_i32_0 = arith.constant 0 : i32
    %c0_i32_1 = arith.constant 0 : i32
    return %c0_i32, %c0_i32_0 : i32, i32
  }
  func.func @transform_8(%arg0: i32) -> (i32, i32, i32) {
    %c0_i32 = arith.constant 0 : i32
    %c0_i32_0 = arith.constant 0 : i32
    %c0_i32_1 = arith.constant 0 : i32
    return %arg0, %c0_i32, %c0_i32_0 : i32, i32, i32
  }
}

</mosaic_0001>

<llo_original>
// kernel: tpu_custom_call.1
$region0: #{tpu_custom_call.1}
  #allocation0 [shape = 'u32[]', space=smem, size = 0x4, offset = 0x4, fixed_abs, tag = 'smem constant byte address 0x4 - core index']
  #allocation1 [shape = 'u32[144,128]{1,0:T(1,128)}', space=vmem, size = 0x12000, scoped, tag = 'internal scratch']
  %s0 = inlined_call_operand.hbm [shape: f32[2,4,128], index: 0, kind: input, shape index: {}]
  %s1 = inlined_call_operand.vmem [shape: f32[128,128], index: 1, kind: input, shape index: {}]
  %s2 = inlined_call_operand.vmem [shape: bf16[3,16,4], index: 2, kind: input, shape index: {}]
  %s3 = inlined_call_operand.vmem [shape: f32[16,1], index: 3, kind: input, shape index: {}]
  %s4 = inlined_call_operand.vmem [shape: bf16[3,32,16], index: 4, kind: input, shape index: {}]
  %s5 = inlined_call_operand.vmem [shape: f32[32,1], index: 5, kind: input, shape index: {}]
  %s6 = inlined_call_operand.vmem [shape: bf16[3,32,32], index: 6, kind: input, shape index: {}]
  %s7 = inlined_call_operand.vmem [shape: f32[32,1], index: 7, kind: input, shape index: {}]
  %s8 = inlined_call_operand.hbm [shape: f32[2,32,128], index: 8, kind: output, shape index: {}]
  %s9 = sld [smem:[#allocation0]]
  $region69: #{tpu_custom_call.1} parent=0
    _
  %s11 = ssub.s32 1, %s9
  %s12 = scalar_select 0, %s11, %s9
  $region1: #{tpu_custom_call.1} parent=0
    #allocation2 [shape = 'u8[4096]{0}', space=vmem, size = 0x1000, scoped, tag = 'input window, operand 0']
    #allocation3 [shape = 's32[2]{0}', space=sflag, size = 0x8, scoped, tag = 'scoped memory for tpu_custom_call.1']
    #allocation4 [shape = 's32[2]{0}', space=sflag, size = 0x8, scoped, tag = 'scoped memory for tpu_custom_call.1']
    #allocation5 [shape = 'u8[32768]{0}', space=vmem, size = 0x8000, scoped, tag = 'output window, operand 0']
    %13 = vsyncpa [#allocation3], 0
    %s14 = scalar_lea.sflag [#allocation3], 1
    %15 = vsyncpa %s14, 0
    %16 = vsyncpa [#allocation4], 0
    %s17 = scalar_lea.sflag [#allocation4], 1
    %18 = vsyncpa %s17, 0
    loop: start=0, step=1, limit=4
    $region2: #{tpu_custom_call.1} parent=1 // loop_pre_header
      _
    $region3: #{tpu_custom_call.1} parent=1 // loop_header
      %s20 = sphi 0, %s24
      %p21 = scmp.ge.s32.totalorder %s20, 4
      %s30 = sphi 0, %s32
      %s33 = sphi 0, %s30
      %s34 = sphi 0, %s33
      %s50 = sphi 0, %s34
      %s54 = sphi 0, %s54
      %s56 = sphi 0, %s54
      %s57 = sphi 0, %s56
      %s71 = sphi 0, %s57
      %s75 = sphi 0, %s75
      %s77 = sphi 0, %s75
      %s78 = sphi 0, %s77
      %s92 = sphi 0, %s78
      %s96 = sphi 0, %s96
      %s98 = sphi 0, %s96
      %s99 = sphi 0, %s98
      %s113 = sphi 0, %s99
      %s117 = sphi 0, %s117
      %s119 = sphi 0, %s117
      %s120 = sphi 0, %s119
      %s134 = sphi 0, %s120
      %s138 = sphi 0, %s138
      %s140 = sphi 0, %s138
      %s141 = sphi 0, %s140
      %s155 = sphi 0, %s141
      %s159 = sphi 0, %s159
      %s161 = sphi 0, %s159
      %s162 = sphi 0, %s161
      %s176 = sphi 0, %s162
      %s180 = sphi 0, %s180
      %s182 = sphi 0, %s180
      %s183 = sphi 0, %s182
      %s197 = sphi 0, %s183
      %s203 = sphi 0, %s205
      %s206 = sphi 0, %s203
      %s207 = sphi 0, %s206
      %s223 = sphi 0, %s207
    $region4: #{tpu_custom_call.1} parent=1 // loop_header_branch
      %23 = sbr.rel (%p21) target = $region8
    $region5: #{tpu_custom_call.1} parent=1 // loop_body
      %s25 = ssub.s32 %s20, 1
      %s26 = ssub.s32 %s20, 2
      %s27 = sadd.s32 %s20, 1
      %s28 = ssub.s32 %s20, %s27
      %p29 = scmp.eq.s32.totalorder %s28, 0
      %s31 = sadd.s32 %s30, 1
      %s32 = scalar_select %p29, %s30, %s31
      %p35 = pneg %p29
      %p36 = scmp.eq.s32.totalorder %s20, 1
      %p37 = por %p35, %p36
      %p38 = scmp.ne.s32.totalorder %s30, %s33
      %p39 = scmp.eq.s32.totalorder %s20, 0
      %p40 = por %p38, %p39
      %p41 = scmp.ne.s32.totalorder %s30, %s33
      %p42 = scmp.eq.s32.totalorder %s25, 1
      %p43 = por %p41, %p42
      %p44 = scmp.ne.s32.totalorder %s33, %s34
      %p45 = scmp.eq.s32.totalorder %s25, 0
      %p46 = por %p44, %p45
      %p47 = scmp.ne.s32.totalorder %s33, %s34
      %p48 = scmp.eq.s32.totalorder %s26, 1
      %p49 = por %p47, %p48
      %p51 = scmp.ne.s32.totalorder %s34, %s50
      %p52 = scmp.eq.s32.totalorder %s26, 0
      %p53 = por %p51, %p52
      %s55 = sadd.s32 %s54, 1
      %p58 = scmp.eq.s32.totalorder %s20, 1
      %p59 = scmp.ne.s32.totalorder %s54, %s56
      %p60 = scmp.eq.s32.totalorder %s20, 0
      %p61 = por %p59, %p60
      %p62 = scmp.ne.s32.totalorder %s54, %s56
      %p63 = scmp.eq.s32.totalorder %s25, 1
      %p64 = por %p62, %p63
      %p65 = scmp.ne.s32.totalorder %s56, %s57
      %p66 = scmp.eq.s32.totalorder %s25, 0
      %p67 = por %p65, %p66
      %p68 = scmp.ne.s32.totalorder %s56, %s57
      %p69 = scmp.eq.s32.totalorder %s26, 1
      %p70 = por %p68, %p69
      %p72 = scmp.ne.s32.totalorder %s57, %s71
      %p73 = scmp.eq.s32.totalorder %s26, 0
      %p74 = por %p72, %p73
      %s76 = sadd.s32 %s75, 1
      %p79 = scmp.eq.s32.totalorder %s20, 1
      %p80 = scmp.ne.s32.totalorder %s75, %s77
      %p81 = scmp.eq.s32.totalorder %s20, 0
      %p82 = por %p80, %p81
      %p83 = scmp.ne.s32.totalorder %s75, %s77
      %p84 = scmp.eq.s32.totalorder %s25, 1
      %p85 = por %p83, %p84
      %p86 = scmp.ne.s32.totalorder %s77, %s78
      %p87 = scmp.eq.s32.totalorder %s25, 0
      %p88 = por %p86, %p87
      %p89 = scmp.ne.s32.totalorder %s77, %s78
      %p90 = scmp.eq.s32.totalorder %s26, 1
      %p91 = por %p89, %p90
      %p93 = scmp.ne.s32.totalorder %s78, %s92
      %p94 = scmp.eq.s32.totalorder %s26, 0
      %p95 = por %p93, %p94
      %s97 = sadd.s32 %s96, 1
      %p100 = scmp.eq.s32.totalorder %s20, 1
      %p101 = scmp.ne.s32.totalorder %s96, %s98
      %p102 = scmp.eq.s32.totalorder %s20, 0
      %p103 = por %p101, %p102
      %p104 = scmp.ne.s32.totalorder %s96, %s98
      %p105 = scmp.eq.s32.totalorder %s25, 1
      %p106 = por %p104, %p105
      %p107 = scmp.ne.s32.totalorder %s98, %s99
      %p108 = scmp.eq.s32.totalorder %s25, 0
      %p109 = por %p107, %p108
      %p110 = scmp.ne.s32.totalorder %s98, %s99
      %p111 = scmp.eq.s32.totalorder %s26, 1
      %p112 = por %p110, %p111
      %p114 = scmp.ne.s32.totalorder %s99, %s113
      %p115 = scmp.eq.s32.totalorder %s26, 0
      %p116 = por %p114, %p115
      %s118 = sadd.s32 %s117, 1
      %p121 = scmp.eq.s32.totalorder %s20, 1
      %p122 = scmp.ne.s32.totalorder %s117, %s119
      %p123 = scmp.eq.s32.totalorder %s20, 0
      %p124 = por %p122, %p123
      %p125 = scmp.ne.s32.totalorder %s117, %s119
      %p126 = scmp.eq.s32.totalorder %s25, 1
      %p127 = por %p125, %p126
      %p128 = scmp.ne.s32.totalorder %s119, %s120
      %p129 = scmp.eq.s32.totalorder %s25, 0
      %p130 = por %p128, %p129
      %p131 = scmp.ne.s32.totalorder %s119, %s120
      %p132 = scmp.eq.s32.totalorder %s26, 1
      %p133 = por %p131, %p132
      %p135 = scmp.ne.s32.totalorder %s120, %s134
      %p136 = scmp.eq.s32.totalorder %s26, 0
      %p137 = por %p135, %p136
      %s139 = sadd.s32 %s138, 1
      %p142 = scmp.eq.s32.totalorder %s20, 1
      %p143 = scmp.ne.s32.totalorder %s138, %s140
      %p144 = scmp.eq.s32.totalorder %s20, 0
      %p145 = por %p143, %p144
      %p146 = scmp.ne.s32.totalorder %s138, %s140
      %p147 = scmp.eq.s32.totalorder %s25, 1
      %p148 = por %p146, %p147
      %p149 = scmp.ne.s32.totalorder %s140, %s141
      %p150 = scmp.eq.s32.totalorder %s25, 0
      %p151 = por %p149, %p150
      %p152 = scmp.ne.s32.totalorder %s140, %s141
      %p153 = scmp.eq.s32.totalorder %s26, 1
      %p154 = por %p152, %p153
      %p156 = scmp.ne.s32.totalorder %s141, %s155
      %p157 = scmp.eq.s32.totalorder %s26, 0
      %p158 = por %p156, %p157
      %s160 = sadd.s32 %s159, 1
      %p163 = scmp.eq.s32.totalorder %s20, 1
      %p164 = scmp.ne.s32.totalorder %s159, %s161
      %p165 = scmp.eq.s32.totalorder %s20, 0
      %p166 = por %p164, %p165
      %p167 = scmp.ne.s32.totalorder %s159, %s161
      %p168 = scmp.eq.s32.totalorder %s25, 1
      %p169 = por %p167, %p168
      %p170 = scmp.ne.s32.totalorder %s161, %s162
      %p171 = scmp.eq.s32.totalorder %s25, 0
      %p172 = por %p170, %p171
      %p173 = scmp.ne.s32.totalorder %s161, %s162
      %p174 = scmp.eq.s32.totalorder %s26, 1
      %p175 = por %p173, %p174
      %p177 = scmp.ne.s32.totalorder %s162, %s176
      %p178 = scmp.eq.s32.totalorder %s26, 0
      %p179 = por %p177, %p178
      %s181 = sadd.s32 %s180, 1
      %p184 = scmp.eq.s32.totalorder %s20, 1
      %p185 = scmp.ne.s32.totalorder %s180, %s182
      %p186 = scmp.eq.s32.totalorder %s20, 0
      %p187 = por %p185, %p186
      %p188 = scmp.ne.s32.totalorder %s180, %s182
      %p189 = scmp.eq.s32.totalorder %s25, 1
      %p190 = por %p188, %p189
      %p191 = scmp.ne.s32.totalorder %s182, %s183
      %p192 = scmp.eq.s32.totalorder %s25, 0
      %p193 = por %p191, %p192
      %p194 = scmp.ne.s32.totalorder %s182, %s183
      %p195 = scmp.eq.s32.totalorder %s26, 1
      %p196 = por %p194, %p195
      %p198 = scmp.ne.s32.totalorder %s183, %s197
      %p199 = scmp.eq.s32.totalorder %s26, 0
      %p200 = por %p198, %p199
      %s201 = ssub.s32 %s20, %s27
      %p202 = scmp.eq.s32.totalorder %s201, 0
      %s204 = sadd.s32 %s203, 1
      %s205 = scalar_select %p202, %s203, %s204
      %p208 = pneg %p202
      %p209 = scmp.eq.s32.totalorder %s20, 1
      %p210 = por %p208, %p209
      %p211 = scmp.ne.s32.totalorder %s203, %s206
      %p212 = scmp.eq.s32.totalorder %s20, 0
      %p213 = por %p211, %p212
      %p214 = scmp.ne.s32.totalorder %s203, %s206
      %p215 = scmp.eq.s32.totalorder %s25, 1
      %p216 = por %p214, %p215
      %p217 = scmp.ne.s32.totalorder %s206, %s207
      %p218 = scmp.eq.s32.totalorder %s25, 0
      %p219 = por %p217, %p218
      %p220 = scmp.ne.s32.totalorder %s206, %s207
      %p221 = scmp.eq.s32.totalorder %s26, 1
      %p222 = por %p220, %p221
      %p224 = scmp.ne.s32.totalorder %s207, %s223
      %p225 = scmp.eq.s32.totalorder %s26, 0
      %p226 = por %p224, %p225
      %p227 = scmp.le.s32.totalorder 1, %s20
      %p228 = scmp.lt.s32.totalorder %s20, 3
      %p229 = pnand %p227, %p228
      %p230 = pneg %p229
      // Predicated region
      $region9: #{tpu_custom_call.1} parent=5 // pred_check
        _
      $region10: #{tpu_custom_call.1} parent=5 // pred_check_branch
        %232 = sbr.rel (%p229) target = $region12
      $region11: #{tpu_custom_call.1} parent=5 // pred_region
        %s233 = ssub.s32 %s20, 1
        // Predicated region
        $region13: #{tpu_custom_call.1} parent=11 // pred_check
          %p234 = pneg %p67
        $region14: #{tpu_custom_call.1} parent=11 // pred_check_branch
          %236 = sbr.rel (%p234) target = $region16
        $region15: #{tpu_custom_call.1} parent=11 // pred_region
          _
        $region16: #{tpu_custom_call.1} parent=11 // pred_fallthru
          _
        // Predicated region
        $region17: #{tpu_custom_call.1} parent=11 // pred_check
          %p237 = pneg %p88
        $region18: #{tpu_custom_call.1} parent=11 // pred_check_branch
          %239 = sbr.rel (%p237) target = $region20
        $region19: #{tpu_custom_call.1} parent=11 // pred_region
          _
        $region20: #{tpu_custom_call.1} parent=11 // pred_fallthru
          _
        // Predicated region
        $region21: #{tpu_custom_call.1} parent=11 // pred_check
          %p240 = pneg %p109
        $region22: #{tpu_custom_call.1} parent=11 // pred_check_branch
          %242 = sbr.rel (%p240) target = $region24
        $region23: #{tpu_custom_call.1} parent=11 // pred_region
          _
        $region24: #{tpu_custom_call.1} parent=11 // pred_fallthru
          _
        // Predicated region
        $region25: #{tpu_custom_call.1} parent=11 // pred_check
          %p243 = pneg %p130
        $region26: #{tpu_custom_call.1} parent=11 // pred_check_branch
          %245 = sbr.rel (%p243) target = $region28
        $region27: #{tpu_custom_call.1} parent=11 // pred_region
          _
        $region28: #{tpu_custom_call.1} parent=11 // pred_fallthru
          _
        // Predicated region
        $region29: #{tpu_custom_call.1} parent=11 // pred_check
          %p246 = pneg %p151
        $region30: #{tpu_custom_call.1} parent=11 // pred_check_branch
          %248 = sbr.rel (%p246) target = $region32
        $region31: #{tpu_custom_call.1} parent=11 // pred_region
          _
        $region32: #{tpu_custom_call.1} parent=11 // pred_fallthru
          _
        // Predicated region
        $region33: #{tpu_custom_call.1} parent=11 // pred_check
          %p249 = pneg %p172
        $region34: #{tpu_custom_call.1} parent=11 // pred_check_branch
          %251 = sbr.rel (%p249) target = $region36
        $region35: #{tpu_custom_call.1} parent=11 // pred_region
          _
        $region36: #{tpu_custom_call.1} parent=11 // pred_fallthru
          _
        // Predicated region
        $region37: #{tpu_custom_call.1} parent=11 // pred_check
          %p252 = pneg %p193
        $region38: #{tpu_custom_call.1} parent=11 // pred_check_branch
          %254 = sbr.rel (%p252) target = $region40
        $region39: #{tpu_custom_call.1} parent=11 // pred_region
          _
        $region40: #{tpu_custom_call.1} parent=11 // pred_fallthru
          _
      $region12: #{tpu_custom_call.1} parent=5 // pred_fallthru
        _
      %p255 = scmp.lt.s32.totalorder %s20, 2
      // Predicated region
      $region41: #{tpu_custom_call.1} parent=5 // pred_check
        %p256 = pneg %p255
      $region42: #{tpu_custom_call.1} parent=5 // pred_check_branch
        %258 = sbr.rel (%p256) target = $region44
      $region43: #{tpu_custom_call.1} parent=5 // pred_region
        // Predicated region
        $region45: #{tpu_custom_call.1} parent=43 // pred_check
          %p259 = pneg %p40
        $region46: #{tpu_custom_call.1} parent=43 // pred_check_branch
          %261 = sbr.rel (%p259) target = $region48
        $region47: #{tpu_custom_call.1} parent=43 // pred_region
          %s262 = sand.u32 %s30, 1
          %s263 = scalar_lea.sflag [#allocation3], %s262
          %s264 = sand.u32 %s30, 1
          %s265 = smul.addr %s264, 4
          %s266 = scalar_lea.vmem [#allocation2], %s265
          %s268 = ssub.s32 64, 64
          %269 = vsyncadd %s263, %s268
          %s270 = smul.addr %s20, 64
          %s271 = scalar_lea.hbm %s0, %s270
          %s273 = sshll.u32 %s266, 4
          %s274 = int_to_ptr.vmem [resolvable:$true] %s273
          %276 = dma.hbm_to_vmem [thread:$0]  %s271, 64, %s274, %s263
        $region48: #{tpu_custom_call.1} parent=43 // pred_fallthru
          _
      $region44: #{tpu_custom_call.1} parent=5 // pred_fallthru
        _
      %p277 = scmp.le.s32.totalorder 1, %s20
      %p278 = scmp.lt.s32.totalorder %s20, 3
      %p279 = pnand %p277, %p278
      %p280 = pneg %p279
      // Predicated region
      $region49: #{tpu_custom_call.1} parent=5 // pred_check
        _
      $region50: #{tpu_custom_call.1} parent=5 // pred_check_branch
        %282 = sbr.rel (%p279) target = $region52
      $region51: #{tpu_custom_call.1} parent=5 // pred_region
        %s283 = ssub.s32 %s20, 1
        %s284 = sand.u32 %s33, 1
        %s285 = scalar_lea.sflag [#allocation3], %s284
        %s286 = sand.u32 %s33, 1
        %s287 = smul.addr %s286, 4
        %s288 = scalar_lea.vmem [#allocation2], %s287
        // Predicated region
        $region53: #{tpu_custom_call.1} parent=51 // pred_check
          %p289 = pneg %p46
        $region54: #{tpu_custom_call.1} parent=51 // pred_check_branch
          %291 = sbr.rel (%p289) target = $region56
        $region55: #{tpu_custom_call.1} parent=51 // pred_region
          %292 = dma.done %s285, 64
        $region56: #{tpu_custom_call.1} parent=51 // pred_fallthru
          _
        %s293 = sand.u32 %s33, 1
        %s294 = scalar_lea.sflag [#allocation3], %s293
        %s295 = sand.u32 %s33, 1
        %s296 = smul.addr %s295, 4
        %s297 = scalar_lea.vmem [#allocation2], %s296
        %p298 = pneg %p46
        %p299 = pneg %p43
        %p300 = pneg %p67
        %p301 = pneg %p64
        %p302 = pneg %p88
        %p303 = pneg %p85
        %p304 = pneg %p109
        %p305 = pneg %p106
        %p306 = pneg %p130
        %p307 = pneg %p127
        %p308 = pneg %p151
        %p309 = pneg %p148
        %p310 = pneg %p172
        %p311 = pneg %p169
        %p312 = pneg %p193
        %p313 = pneg %p190
        %p314 = pneg %p219
        %p315 = pneg %p216
        %s316 = sand.u32 %s206, 1
        %s317 = scalar_lea.sflag [#allocation4], %s316
        %s318 = sand.u32 %s206, 1
        %s319 = smul.addr %s318, 32
        %s320 = scalar_lea.vmem [#allocation5], %s319
        %v322 = vld [vmem:[%s288] sm:$0xf]
        %324 = vrot.lane.b32.xlu0 %v322, 1
        %v325 = vpop.permute.xlu0 %324
        %vm327 = vcmask 7168
        %v328 = vsel %vm327, 0.0, %v325
        %v329 = vpack.c.bf16 %v328, %v328
        %v330 = vld [vmem:[%s2] sm:$0xf]
        %v331 = vld [vmem:[%s2 + $0x4] sm:$0xf]
        %v332 = vpack.c.bf16 %v322, %v322
        %s333 = scalar_lea.vmem %s2, 8
        %v334 = vld [vmem:[%s333] sm:$0xf]
        %v335 = vld [vmem:[%s333 + $0x4] sm:$0xf]
        %v338 = vunpack.c.l.b16 %v334
        %v339 = vunpack.c.l.b16 %v335
        %v340 = vpack.c.b16 %v339, %v338
        %vm341 = vcmask 31744
        %v343 = vsel %vm341, %v340, 0
        %vm345 = vcmask 1041408
        %v347 = vsel %vm345, %v332, 0
        %349 = vmatprep.subr.bf16.mxu0 0
        %350 = vmatpush1.bf16.msra.mxu0 %v347
        %351 = vmatprep.subr.bf16.mxu0 0
        %352 = vmatpush1.bf16.msra.mxu0 0
        %353 = vmatprep.subr.bf16.mxu0 0
        %354 = vmatpush1.bf16.msra.mxu0 0
        %355 = vmatprep.subr.bf16.mxu0 0
        %356 = vmatpush1.bf16.msra.mxu0 0
        %357 = vmatprep.subr.bf16.mxu0 0
        %358 = vmatpush1.bf16.msra.mxu0 0
        %359 = vmatprep.subr.bf16.mxu0 0
        %360 = vmatpush1.bf16.msra.mxu0 0
        %361 = vmatprep.subr.bf16.mxu0 0
        %362 = vmatpush1.bf16.msra.mxu0 0
        %363 = vmatprep.subr.bf16.mxu0 0
        %364 = vmatpush1.bf16.msra.mxu0 0
        %365 = vmatprep.subr.bf16.mxu0 0
        %366 = vmatpush1.bf16.msra.mxu0 0
        %367 = vmatprep.subr.bf16.mxu0 0
        %368 = vmatpush1.bf16.msra.mxu0 0
        %369 = vmatprep.subr.bf16.mxu0 0
        %370 = vmatpush1.bf16.msra.mxu0 0
        %371 = vmatprep.subr.bf16.mxu0 0
        %372 = vmatpush1.bf16.msra.mxu0 0
        %373 = vmatprep.subr.bf16.mxu0 0
        %374 = vmatpush1.bf16.msra.mxu0 0
        %375 = vmatprep.subr.bf16.mxu0 0
        %376 = vmatpush1.bf16.msra.mxu0 0
        %377 = vmatprep.subr.bf16.mxu0 0
        %378 = vmatpush1.bf16.msra.mxu0 0
        %379 = vmatprep.subr.bf16.mxu0 0
        %380 = vmatpush1.bf16.msra.mxu0 0
        %381 = vmatprep.mubr.bf16.mxu0 0
        %382 = vmatmul.mubr.bf16.gmra.mrb[0].mxu0 %v343
        %v383 = vpop.f32.mrb[0].mxu0
        %v384 = vadd.f32 0.0, %v383
        %v385 = vpop.f32.mrb[0].mxu0
        %v386 = vpop.f32.mrb[0].mxu0
        %v387 = vadd.f32 0.0, %v386
        %v388 = vpop.f32.mrb[0].mxu0
        %389 = vdwg.mxu0
        %v392 = vunpack.c.l.b16 %v330
        %v393 = vunpack.c.l.b16 %v331
        %v394 = vpack.c.b16 %v393, %v392
        %v396 = vsel %vm341, %v394, 0
        %v399 = vsel %vm345, %v329, 0
        %401 = vmatprep.subr.bf16.mxu0 0
        %402 = vmatpush1.bf16.msra.mxu0 %v399
        %403 = vmatprep.subr.bf16.mxu0 0
        %404 = vmatpush1.bf16.msra.mxu0 0
        %405 = vmatprep.subr.bf16.mxu0 0
        %406 = vmatpush1.bf16.msra.mxu0 0
        %407 = vmatprep.subr.bf16.mxu0 0
        %408 = vmatpush1.bf16.msra.mxu0 0
        %409 = vmatprep.subr.bf16.mxu0 0
        %410 = vmatpush1.bf16.msra.mxu0 0
        %411 = vmatprep.subr.bf16.mxu0 0
        %412 = vmatpush1.bf16.msra.mxu0 0
        %413 = vmatprep.subr.bf16.mxu0 0
        %414 = vmatpush1.bf16.msra.mxu0 0
        %415 = vmatprep.subr.bf16.mxu0 0
        %416 = vmatpush1.bf16.msra.mxu0 0
        %417 = vmatprep.subr.bf16.mxu0 0
        %418 = vmatpush1.bf16.msra.mxu0 0
        %419 = vmatprep.subr.bf16.mxu0 0
        %420 = vmatpush1.bf16.msra.mxu0 0
        %421 = vmatprep.subr.bf16.mxu0 0
        %422 = vmatpush1.bf16.msra.mxu0 0
        %423 = vmatprep.subr.bf16.mxu0 0
        %424 = vmatpush1.bf16.msra.mxu0 0
        %425 = vmatprep.subr.bf16.mxu0 0
        %426 = vmatpush1.bf16.msra.mxu0 0
        %427 = vmatprep.subr.bf16.mxu0 0
        %428 = vmatpush1.bf16.msra.mxu0 0
        %429 = vmatprep.subr.bf16.mxu0 0
        %430 = vmatpush1.bf16.msra.mxu0 0
        %431 = vmatprep.subr.bf16.mxu0 0
        %432 = vmatpush1.bf16.msra.mxu0 0
        %433 = vmatprep.mubr.bf16.mxu0 0
        %434 = vmatmul.mubr.bf16.gmra.mrb[0].mxu0 %v396
        %v435 = vpop.f32.mrb[0].mxu0
        %v436 = vadd.f32 %v384, %v435
        %v437 = vpop.f32.mrb[0].mxu0
        %v438 = vpop.f32.mrb[0].mxu0
        %v439 = vadd.f32 %v387, %v438
        %v440 = vpop.f32.mrb[0].mxu0
        %441 = vdwg.mxu0
        %442 = vrot.lane.b32.xlu0 %v322, 127
        %v443 = vpop.permute.xlu0 %442
        %vm445 = vcmask 1039360
        %v446 = vsel %vm445, %v443, 0.0
        %v447 = vpack.c.bf16 %v446, %v446
        %s448 = scalar_lea.vmem %s2, 16
        %v449 = vld [vmem:[%s448] sm:$0xf]
        %v450 = vld [vmem:[%s448 + $0x4] sm:$0xf]
        %v453 = vunpack.c.l.b16 %v449
        %v454 = vunpack.c.l.b16 %v450
        %v455 = vpack.c.b16 %v454, %v453
        %v457 = vsel %vm341, %v455, 0
        %v460 = vsel %vm345, %v447, 0
        %462 = vmatprep.subr.bf16.mxu0 0
        %463 = vmatpush1.bf16.msra.mxu0 %v460
        %464 = vmatprep.subr.bf16.mxu0 0
        %465 = vmatpush1.bf16.msra.mxu0 0
        %466 = vmatprep.subr.bf16.mxu0 0
        %467 = vmatpush1.bf16.msra.mxu0 0
        %468 = vmatprep.subr.bf16.mxu0 0
        %469 = vmatpush1.bf16.msra.mxu0 0
        %470 = vmatprep.subr.bf16.mxu0 0
        %471 = vmatpush1.bf16.msra.mxu0 0
        %472 = vmatprep.subr.bf16.mxu0 0
        %473 = vmatpush1.bf16.msra.mxu0 0
        %474 = vmatprep.subr.bf16.mxu0 0
        %475 = vmatpush1.bf16.msra.mxu0 0
        %476 = vmatprep.subr.bf16.mxu0 0
        %477 = vmatpush1.bf16.msra.mxu0 0
        %478 = vmatprep.subr.bf16.mxu0 0
        %479 = vmatpush1.bf16.msra.mxu0 0
        %480 = vmatprep.subr.bf16.mxu0 0
        %481 = vmatpush1.bf16.msra.mxu0 0
        %482 = vmatprep.subr.bf16.mxu0 0
        %483 = vmatpush1.bf16.msra.mxu0 0
        %484 = vmatprep.subr.bf16.mxu0 0
        %485 = vmatpush1.bf16.msra.mxu0 0
        %486 = vmatprep.subr.bf16.mxu0 0
        %487 = vmatpush1.bf16.msra.mxu0 0
        %488 = vmatprep.subr.bf16.mxu0 0
        %489 = vmatpush1.bf16.msra.mxu0 0
        %490 = vmatprep.subr.bf16.mxu0 0
        %491 = vmatpush1.bf16.msra.mxu0 0
        %492 = vmatprep.subr.bf16.mxu0 0
        %493 = vmatpush1.bf16.msra.mxu0 0
        %494 = vmatprep.mubr.bf16.mxu0 0
        %495 = vmatmul.mubr.bf16.gmra.mrb[0].mxu0 %v457
        %v496 = vpop.f32.mrb[0].mxu0
        %v497 = vadd.f32 0.0, %v496
        %v498 = vpop.f32.mrb[0].mxu0
        %v499 = vpop.f32.mrb[0].mxu0
        %v500 = vadd.f32 0.0, %v499
        %v501 = vpop.f32.mrb[0].mxu0
        %502 = vdwg.mxu0
        %v503 = vadd.f32 %v436, %v497
        %v504 = vadd.f32 %v439, %v500
        %v505 = vld [vmem:[%s3] sm:$0xff]
        %v506 = vld [vmem:[%s3 + $0x8] sm:$0xff]
        %508 = vset.pattern.permute.xlu0 0
        %509 = vperm.xlu0 %508, %v505
        %v510 = vpop.permute.xlu0 %509
        %513 = vset.pattern.permute.xlu0 0
        %514 = vperm.xlu0 %513, %v506
        %v515 = vpop.permute.xlu0 %514
        %v517 = vadd.f32 %v503, %v510
        %v518 = vadd.f32 %v504, %v515
        %v519 = vmax.f32 %v517, 0.0
        %v520 = vmax.f32 %v518, 0.0
        %v521 = vlaneseq
        %v522 = vand.u32 %v521, 127
        %vm523 = vcmp.lt.s32.totalorder %v522, 16
        %v524 = vsel %vm523, %v519, 0.0
        %v525 = vsel %vm523, %v520, 0.0
        %528 = vrot.lane.b32.xlu0 %v524, 1
        %v529 = vpop.permute.xlu0 %528
        %530 = vrot.lane.b32.xlu0 %v525, 1
        %v531 = vpop.permute.xlu0 %530
        %v534 = vsel %vm327, 0.0, %v529
        %v535 = vsel %vm327, 0.0, %v531
        %v536 = vmax.f32 %v524, %v534
        %v537 = vmax.f32 %v525, %v535
        %v538 = vld [vmem:[%s1] sm:$0xff]
        %v539 = vld [vmem:[%s1 + $0x8] sm:$0xff]
        %v540 = vld [vmem:[%s1 + $0x10] sm:$0xff]
        %v541 = vld [vmem:[%s1 + $0x18] sm:$0xff]
        %v542 = vld [vmem:[%s1 + $0x20] sm:$0xff]
        %v543 = vld [vmem:[%s1 + $0x28] sm:$0xff]
        %v544 = vld [vmem:[%s1 + $0x30] sm:$0xff]
        %v545 = vld [vmem:[%s1 + $0x38] sm:$0xff]
        %v546 = vld [vmem:[%s1 + $0x40] sm:$0xff]
        %v547 = vld [vmem:[%s1 + $0x48] sm:$0xff]
        %v548 = vld [vmem:[%s1 + $0x50] sm:$0xff]
        %v549 = vld [vmem:[%s1 + $0x58] sm:$0xff]
        %v550 = vld [vmem:[%s1 + $0x60] sm:$0xff]
        %v551 = vld [vmem:[%s1 + $0x68] sm:$0xff]
        %v552 = vld [vmem:[%s1 + $0x70] sm:$0xff]
        %v553 = vld [vmem:[%s1 + $0x78] sm:$0xff]
        %554 = vmatprep.subr.mxu0 0.0
        %555 = vmatpush1.msra.mxu0 %v538
        %556 = vmatprep.subr.mxu0 0.0
        %557 = vmatpush1.msra.mxu0 %v539
        %558 = vmatprep.subr.mxu0 0.0
        %559 = vmatpush1.msra.mxu0 %v540
        %560 = vmatprep.subr.mxu0 0.0
        %561 = vmatpush1.msra.mxu0 %v541
        %562 = vmatprep.subr.mxu0 0.0
        %563 = vmatpush1.msra.mxu0 %v542
        %564 = vmatprep.subr.mxu0 0.0
        %565 = vmatpush1.msra.mxu0 %v543
        %566 = vmatprep.subr.mxu0 0.0
        %567 = vmatpush1.msra.mxu0 %v544
        %568 = vmatprep.subr.mxu0 0.0
        %569 = vmatpush1.msra.mxu0 %v545
        %570 = vmatprep.subr.mxu0 0.0
        %571 = vmatpush1.msra.mxu0 %v546
        %572 = vmatprep.subr.mxu0 0.0
        %573 = vmatpush1.msra.mxu0 %v547
        %574 = vmatprep.subr.mxu0 0.0
        %575 = vmatpush1.msra.mxu0 %v548
        %576 = vmatprep.subr.mxu0 0.0
        %577 = vmatpush1.msra.mxu0 %v549
        %578 = vmatprep.subr.mxu0 0.0
        %579 = vmatpush1.msra.mxu0 %v550
        %580 = vmatprep.subr.mxu0 0.0
        %581 = vmatpush1.msra.mxu0 %v551
        %582 = vmatprep.subr.mxu0 0.0
        %583 = vmatpush1.msra.mxu0 %v552
        %584 = vmatprep.subr.mxu0 0.0
        %585 = vmatpush1.msra.mxu0 %v553
        %586 = vmatprep.subr.mxu0 0.0
        %587 = vmatpush1.msra.mxu0 0.0
        %588 = vmatprep.subr.mxu0 0.0
        %589 = vmatpush1.msra.mxu0 0.0
        %590 = vmatprep.subr.mxu0 0.0
        %591 = vmatpush1.msra.mxu0 0.0
        %592 = vmatprep.subr.mxu0 0.0
        %593 = vmatpush1.msra.mxu0 0.0
        %594 = vmatprep.subr.mxu0 0.0
        %595 = vmatpush1.msra.mxu0 0.0
        %596 = vmatprep.subr.mxu0 0.0
        %597 = vmatpush1.msra.mxu0 0.0
        %598 = vmatprep.subr.mxu0 0.0
        %599 = vmatpush1.msra.mxu0 0.0
        %600 = vmatprep.subr.mxu0 0.0
        %601 = vmatpush1.msra.mxu0 0.0
        %602 = vmatprep.subr.mxu0 0.0
        %603 = vmatpush1.msra.mxu0 0.0
        %604 = vmatprep.subr.mxu0 0.0
        %605 = vmatpush1.msra.mxu0 0.0
        %606 = vmatprep.subr.mxu0 0.0
        %607 = vmatpush1.msra.mxu0 0.0
        %608 = vmatprep.subr.mxu0 0.0
        %609 = vmatpush1.msra.mxu0 0.0
        %610 = vmatprep.subr.mxu0 0.0
        %611 = vmatpush1.msra.mxu0 0.0
        %612 = vmatprep.subr.mxu0 0.0
        %613 = vmatpush1.msra.mxu0 0.0
        %614 = vmatprep.subr.mxu0 0.0
        %615 = vmatpush1.msra.mxu0 0.0
        %616 = vmatprep.subr.mxu0 0.0
        %617 = vmatpush1.msra.mxu0 0.0
        %618 = vmatprep.mubr.f32.mxu0 0.0
        %619 = vmatmul.mubr.f32.gmra.mrb[0].mxu0 %v536
        %v620 = vpop.f32.mrb[0].mxu0
        %v621 = vadd.f32 0.0, %v620
        %v622 = vpop.f32.mrb[0].mxu0
        %623 = vmatprep.mubr.f32.mxu0 0.0
        %624 = vmatmul.mubr.f32.gmra.mrb[0].mxu0 %v537
        %v625 = vpop.f32.mrb[0].mxu0
        %v626 = vadd.f32 0.0, %v625
        %v627 = vpop.f32.mrb[0].mxu0
        %628 = vdwg.mxu0
        %631 = vrot.lane.b32.xlu0 %v621, 2
        %v632 = vpop.permute.xlu0 %631
        %633 = vrot.lane.b32.xlu0 %v626, 2
        %v634 = vpop.permute.xlu0 %633
        %vm637 = vcmask 15360
        %v638 = vsel %vm637, 0.0, %v632
        %v639 = vsel %vm637, 0.0, %v634
        %v640 = vpack.c.bf16 %v639, %v638
        %v641 = vld [vmem:[%s4] sm:$0xf]
        %v642 = vld [vmem:[%s4 + $0x4] sm:$0xf]
        %v643 = vld [vmem:[%s4 + $0x8] sm:$0xf]
        %v644 = vld [vmem:[%s4 + $0xc] sm:$0xf]
        %645 = vrot.lane.b32.xlu0 %v621, 1
        %v646 = vpop.permute.xlu0 %645
        %647 = vrot.lane.b32.xlu0 %v626, 1
        %v648 = vpop.permute.xlu0 %647
        %v651 = vsel %vm327, 0.0, %v646
        %v652 = vsel %vm327, 0.0, %v648
        %v653 = vpack.c.bf16 %v652, %v651
        %s654 = scalar_lea.vmem %s4, 16
        %v655 = vld [vmem:[%s654] sm:$0xf]
        %v656 = vld [vmem:[%s654 + $0x4] sm:$0xf]
        %v657 = vld [vmem:[%s654 + $0x8] sm:$0xf]
        %v658 = vld [vmem:[%s654 + $0xc] sm:$0xf]
        %v663 = vunpack.c.l.b16 %v655
        %v664 = vunpack.c.l.b16 %v656
        %v665 = vunpack.c.l.b16 %v657
        %v666 = vunpack.c.l.b16 %v658
        %v667 = vpack.c.b16 %v664, %v663
        %v668 = vpack.c.b16 %v666, %v665
        %vm669 = vcmask 130048
        %v671 = vsel %vm669, %v667, 0
        %v674 = vsel %vm669, %v668, 0
        %676 = vmatprep.subr.bf16.mxu0 0
        %677 = vmatpush1.bf16.msra.mxu0 %v653
        %678 = vmatprep.subr.bf16.mxu0 0
        %679 = vmatpush1.bf16.msra.mxu0 0
        %680 = vmatprep.subr.bf16.mxu0 0
        %681 = vmatpush1.bf16.msra.mxu0 0
        %682 = vmatprep.subr.bf16.mxu0 0
        %683 = vmatpush1.bf16.msra.mxu0 0
        %684 = vmatprep.subr.bf16.mxu0 0
        %685 = vmatpush1.bf16.msra.mxu0 0
        %686 = vmatprep.subr.bf16.mxu0 0
        %687 = vmatpush1.bf16.msra.mxu0 0
        %688 = vmatprep.subr.bf16.mxu0 0
        %689 = vmatpush1.bf16.msra.mxu0 0
        %690 = vmatprep.subr.bf16.mxu0 0
        %691 = vmatpush1.bf16.msra.mxu0 0
        %692 = vmatprep.subr.bf16.mxu0 0
        %693 = vmatpush1.bf16.msra.mxu0 0
        %694 = vmatprep.subr.bf16.mxu0 0
        %695 = vmatpush1.bf16.msra.mxu0 0
        %696 = vmatprep.subr.bf16.mxu0 0
        %697 = vmatpush1.bf16.msra.mxu0 0
        %698 = vmatprep.subr.bf16.mxu0 0
        %699 = vmatpush1.bf16.msra.mxu0 0
        %700 = vmatprep.subr.bf16.mxu0 0
        %701 = vmatpush1.bf16.msra.mxu0 0
        %702 = vmatprep.subr.bf16.mxu0 0
        %703 = vmatpush1.bf16.msra.mxu0 0
        %704 = vmatprep.subr.bf16.mxu0 0
        %705 = vmatpush1.bf16.msra.mxu0 0
        %706 = vmatprep.subr.bf16.mxu0 0
        %707 = vmatpush1.bf16.msra.mxu0 0
        %708 = vmatprep.mubr.bf16.mxu0 0
        %709 = vmatmul.mubr.bf16.gmra.mrb[0].mxu0 %v671
        %v710 = vpop.f32.mrb[0].mxu0
        %v711 = vadd.f32 0.0, %v710
        %v712 = vpop.f32.mrb[0].mxu0
        %v713 = vpop.f32.mrb[0].mxu0
        %v714 = vadd.f32 0.0, %v713
        %v715 = vpop.f32.mrb[0].mxu0
        %716 = vmatprep.mubr.bf16.mxu0 0
        %717 = vmatmul.mubr.bf16.gmra.mrb[0].mxu0 %v674
        %v718 = vpop.f32.mrb[0].mxu0
        %v719 = vadd.f32 0.0, %v718
        %v720 = vpop.f32.mrb[0].mxu0
        %v721 = vpop.f32.mrb[0].mxu0
        %v722 = vadd.f32 0.0, %v721
        %v723 = vpop.f32.mrb[0].mxu0
        %724 = vdwg.mxu0
        %v729 = vunpack.c.l.b16 %v641
        %v730 = vunpack.c.l.b16 %v642
        %v731 = vunpack.c.l.b16 %v643
        %v732 = vunpack.c.l.b16 %v644
        %v733 = vpack.c.b16 %v730, %v729
        %v734 = vpack.c.b16 %v732, %v731
        %v736 = vsel %vm669, %v733, 0
        %v739 = vsel %vm669, %v734, 0
        %741 = vmatprep.subr.bf16.mxu0 0
        %742 = vmatpush1.bf16.msra.mxu0 %v640
        %743 = vmatprep.subr.bf16.mxu0 0
        %744 = vmatpush1.bf16.msra.mxu0 0
        %745 = vmatprep.subr.bf16.mxu0 0
        %746 = vmatpush1.bf16.msra.mxu0 0
        %747 = vmatprep.subr.bf16.mxu0 0
        %748 = vmatpush1.bf16.msra.mxu0 0
        %749 = vmatprep.subr.bf16.mxu0 0
        %750 = vmatpush1.bf16.msra.mxu0 0
        %751 = vmatprep.subr.bf16.mxu0 0
        %752 = vmatpush1.bf16.msra.mxu0 0
        %753 = vmatprep.subr.bf16.mxu0 0
        %754 = vmatpush1.bf16.msra.mxu0 0
        %755 = vmatprep.subr.bf16.mxu0 0
        %756 = vmatpush1.bf16.msra.mxu0 0
        %757 = vmatprep.subr.bf16.mxu0 0
        %758 = vmatpush1.bf16.msra.mxu0 0
        %759 = vmatprep.subr.bf16.mxu0 0
        %760 = vmatpush1.bf16.msra.mxu0 0
        %761 = vmatprep.subr.bf16.mxu0 0
        %762 = vmatpush1.bf16.msra.mxu0 0
        %763 = vmatprep.subr.bf16.mxu0 0
        %764 = vmatpush1.bf16.msra.mxu0 0
        %765 = vmatprep.subr.bf16.mxu0 0
        %766 = vmatpush1.bf16.msra.mxu0 0
        %767 = vmatprep.subr.bf16.mxu0 0
        %768 = vmatpush1.bf16.msra.mxu0 0
        %769 = vmatprep.subr.bf16.mxu0 0
        %770 = vmatpush1.bf16.msra.mxu0 0
        %771 = vmatprep.subr.bf16.mxu0 0
        %772 = vmatpush1.bf16.msra.mxu0 0
        %773 = vmatprep.mubr.bf16.mxu0 0
        %774 = vmatmul.mubr.bf16.gmra.mrb[0].mxu0 %v736
        %v775 = vpop.f32.mrb[0].mxu0
        %v776 = vadd.f32 %v711, %v775
        %v777 = vpop.f32.mrb[0].mxu0
        %v778 = vpop.f32.mrb[0].mxu0
        %v779 = vadd.f32 %v714, %v778
        %v780 = vpop.f32.mrb[0].mxu0
        %781 = vmatprep.mubr.bf16.mxu0 0
        %782 = vmatmul.mubr.bf16.gmra.mrb[0].mxu0 %v739
        %v783 = vpop.f32.mrb[0].mxu0
        %v784 = vadd.f32 %v719, %v783
        %v785 = vpop.f32.mrb[0].mxu0
        %v786 = vpop.f32.mrb[0].mxu0
        %v787 = vadd.f32 %v722, %v786
        %v788 = vpop.f32.mrb[0].mxu0
        %789 = vdwg.mxu0
        %v790 = vpack.c.bf16 %v626, %v621
        %s791 = scalar_lea.vmem %s4, 32
        %v792 = vld [vmem:[%s791] sm:$0xf]
        %v793 = vld [vmem:[%s791 + $0x4] sm:$0xf]
        %v794 = vld [vmem:[%s791 + $0x8] sm:$0xf]
        %v795 = vld [vmem:[%s791 + $0xc] sm:$0xf]
        %v800 = vunpack.c.l.b16 %v792
        %v801 = vunpack.c.l.b16 %v793
        %v802 = vunpack.c.l.b16 %v794
        %v803 = vunpack.c.l.b16 %v795
        %v804 = vpack.c.b16 %v801, %v800
        %v805 = vpack.c.b16 %v803, %v802
        %v807 = vsel %vm669, %v804, 0
        %v810 = vsel %vm669, %v805, 0
        %812 = vmatprep.subr.bf16.mxu0 0
        %813 = vmatpush1.bf16.msra.mxu0 %v790
        %814 = vmatprep.subr.bf16.mxu0 0
        %815 = vmatpush1.bf16.msra.mxu0 0
        %816 = vmatprep.subr.bf16.mxu0 0
        %817 = vmatpush1.bf16.msra.mxu0 0
        %818 = vmatprep.subr.bf16.mxu0 0
        %819 = vmatpush1.bf16.msra.mxu0 0
        %820 = vmatprep.subr.bf16.mxu0 0
        %821 = vmatpush1.bf16.msra.mxu0 0
        %822 = vmatprep.subr.bf16.mxu0 0
        %823 = vmatpush1.bf16.msra.mxu0 0
        %824 = vmatprep.subr.bf16.mxu0 0
        %825 = vmatpush1.bf16.msra.mxu0 0
        %826 = vmatprep.subr.bf16.mxu0 0
        %827 = vmatpush1.bf16.msra.mxu0 0
        %828 = vmatprep.subr.bf16.mxu0 0
        %829 = vmatpush1.bf16.msra.mxu0 0
        %830 = vmatprep.subr.bf16.mxu0 0
        %831 = vmatpush1.bf16.msra.mxu0 0
        %832 = vmatprep.subr.bf16.mxu0 0
        %833 = vmatpush1.bf16.msra.mxu0 0
        %834 = vmatprep.subr.bf16.mxu0 0
        %835 = vmatpush1.bf16.msra.mxu0 0
        %836 = vmatprep.subr.bf16.mxu0 0
        %837 = vmatpush1.bf16.msra.mxu0 0
        %838 = vmatprep.subr.bf16.mxu0 0
        %839 = vmatpush1.bf16.msra.mxu0 0
        %840 = vmatprep.subr.bf16.mxu0 0
        %841 = vmatpush1.bf16.msra.mxu0 0
        %842 = vmatprep.subr.bf16.mxu0 0
        %843 = vmatpush1.bf16.msra.mxu0 0
        %844 = vmatprep.mubr.bf16.mxu0 0
        %845 = vmatmul.mubr.bf16.gmra.mrb[0].mxu0 %v807
        %v846 = vpop.f32.mrb[0].mxu0
        %v847 = vadd.f32 0.0, %v846
        %v848 = vpop.f32.mrb[0].mxu0
        %v849 = vpop.f32.mrb[0].mxu0
        %v850 = vadd.f32 0.0, %v849
        %v851 = vpop.f32.mrb[0].mxu0
        %852 = vmatprep.mubr.bf16.mxu0 0
        %853 = vmatmul.mubr.bf16.gmra.mrb[0].mxu0 %v810
        %v854 = vpop.f32.mrb[0].mxu0
        %v855 = vadd.f32 0.0, %v854
        %v856 = vpop.f32.mrb[0].mxu0
        %v857 = vpop.f32.mrb[0].mxu0
        %v858 = vadd.f32 0.0, %v857
        %v859 = vpop.f32.mrb[0].mxu0
        %860 = vdwg.mxu0
        %v861 = vadd.f32 %v776, %v847
        %v862 = vadd.f32 %v779, %v850
        %v863 = vadd.f32 %v784, %v855
        %v864 = vadd.f32 %v787, %v858
        %v865 = vld [vmem:[%s5] sm:$0xff]
        %v866 = vld [vmem:[%s5 + $0x8] sm:$0xff]
        %v867 = vld [vmem:[%s5 + $0x10] sm:$0xff]
        %v868 = vld [vmem:[%s5 + $0x18] sm:$0xff]
        %870 = vset.pattern.permute.xlu0 0
        %871 = vperm.xlu0 %870, %v865
        %v872 = vpop.permute.xlu0 %871
        %875 = vset.pattern.permute.xlu0 0
        %876 = vperm.xlu0 %875, %v866
        %v877 = vpop.permute.xlu0 %876
        %880 = vset.pattern.permute.xlu0 0
        %881 = vperm.xlu0 %880, %v867
        %v882 = vpop.permute.xlu0 %881
        %885 = vset.pattern.permute.xlu0 0
        %886 = vperm.xlu0 %885, %v868
        %v887 = vpop.permute.xlu0 %886
        %v889 = vadd.f32 %v861, %v872
        %v890 = vadd.f32 %v862, %v877
        %v891 = vadd.f32 %v863, %v882
        %v892 = vadd.f32 %v864, %v887
        %v893 = vmax.f32 %v889, 0.0
        %v894 = vmax.f32 %v890, 0.0
        %v895 = vmax.f32 %v891, 0.0
        %v896 = vmax.f32 %v892, 0.0
        %vm897 = vcmp.lt.s32.totalorder %v522, 11
        %v898 = vsel %vm897, %v893, 0.0
        %v899 = vsel %vm897, %v894, 0.0
        %v900 = vsel %vm897, %v895, 0.0
        %v901 = vsel %vm897, %v896, 0.0
        %906 = vrot.lane.b32.xlu0 %v898, 2
        %v907 = vpop.permute.xlu0 %906
        %908 = vrot.lane.b32.xlu0 %v899, 2
        %v909 = vpop.permute.xlu0 %908
        %910 = vrot.lane.b32.xlu0 %v900, 2
        %v911 = vpop.permute.xlu0 %910
        %912 = vrot.lane.b32.xlu0 %v901, 2
        %v913 = vpop.permute.xlu0 %912
        %v918 = vsel %vm637, 0.0, %v907
        %v919 = vsel %vm637, 0.0, %v909
        %v920 = vsel %vm637, 0.0, %v911
        %v921 = vsel %vm637, 0.0, %v913
        %v922 = vpack.c.bf16 %v919, %v918
        %v923 = vpack.c.bf16 %v921, %v920
        %v924 = vld [vmem:[%s6] sm:$0xf]
        %v925 = vld [vmem:[%s6 + $0x4] sm:$0xf]
        %v926 = vld [vmem:[%s6 + $0x8] sm:$0xf]
        %v927 = vld [vmem:[%s6 + $0xc] sm:$0xf]
        %928 = vrot.lane.b32.xlu0 %v898, 1
        %v929 = vpop.permute.xlu0 %928
        %930 = vrot.lane.b32.xlu0 %v899, 1
        %v931 = vpop.permute.xlu0 %930
        %932 = vrot.lane.b32.xlu0 %v900, 1
        %v933 = vpop.permute.xlu0 %932
        %934 = vrot.lane.b32.xlu0 %v901, 1
        %v935 = vpop.permute.xlu0 %934
        %v940 = vsel %vm327, 0.0, %v929
        %v941 = vsel %vm327, 0.0, %v931
        %v942 = vsel %vm327, 0.0, %v933
        %v943 = vsel %vm327, 0.0, %v935
        %v944 = vpack.c.bf16 %v941, %v940
        %v945 = vpack.c.bf16 %v943, %v942
        %s946 = scalar_lea.vmem %s6, 16
        %v947 = vld [vmem:[%s946] sm:$0xf]
        %v948 = vld [vmem:[%s946 + $0x4] sm:$0xf]
        %v949 = vld [vmem:[%s946 + $0x8] sm:$0xf]
        %v950 = vld [vmem:[%s946 + $0xc] sm:$0xf]
        %v955 = vunpack.c.l.b16 %v947
        %v956 = vunpack.c.l.b16 %v948
        %v957 = vunpack.c.l.b16 %v949
        %v958 = vunpack.c.l.b16 %v950
        %v959 = vpack.c.b16 %v956, %v955
        %v960 = vpack.c.b16 %v958, %v957
        %vm961 = vcmask 261120
        %v963 = vsel %vm961, %v959, 0
        %v966 = vsel %vm961, %v960, 0
        %968 = vmatprep.subr.bf16.mxu0 0
        %969 = vmatpush1.bf16.msra.mxu0 %v944
        %970 = vmatprep.subr.bf16.mxu0 0
        %971 = vmatpush1.bf16.msra.mxu0 %v945
        %972 = vmatprep.subr.bf16.mxu0 0
        %973 = vmatpush1.bf16.msra.mxu0 0
        %974 = vmatprep.subr.bf16.mxu0 0
        %975 = vmatpush1.bf16.msra.mxu0 0
        %976 = vmatprep.subr.bf16.mxu0 0
        %977 = vmatpush1.bf16.msra.mxu0 0
        %978 = vmatprep.subr.bf16.mxu0 0
        %979 = vmatpush1.bf16.msra.mxu0 0
        %980 = vmatprep.subr.bf16.mxu0 0
        %981 = vmatpush1.bf16.msra.mxu0 0
        %982 = vmatprep.subr.bf16.mxu0 0
        %983 = vmatpush1.bf16.msra.mxu0 0
        %984 = vmatprep.subr.bf16.mxu0 0
        %985 = vmatpush1.bf16.msra.mxu0 0
        %986 = vmatprep.subr.bf16.mxu0 0
        %987 = vmatpush1.bf16.msra.mxu0 0
        %988 = vmatprep.subr.bf16.mxu0 0
        %989 = vmatpush1.bf16.msra.mxu0 0
        %990 = vmatprep.subr.bf16.mxu0 0
        %991 = vmatpush1.bf16.msra.mxu0 0
        %992 = vmatprep.subr.bf16.mxu0 0
        %993 = vmatpush1.bf16.msra.mxu0 0
        %994 = vmatprep.subr.bf16.mxu0 0
        %995 = vmatpush1.bf16.msra.mxu0 0
        %996 = vmatprep.subr.bf16.mxu0 0
        %997 = vmatpush1.bf16.msra.mxu0 0
        %998 = vmatprep.subr.bf16.mxu0 0
        %999 = vmatpush1.bf16.msra.mxu0 0
        %1000 = vmatprep.mubr.bf16.mxu0 0
        %1001 = vmatmul.mubr.bf16.gmra.mrb[0].mxu0 %v963
        %v1002 = vpop.f32.mrb[0].mxu0
        %v1003 = vadd.f32 0.0, %v1002
        %v1004 = vpop.f32.mrb[0].mxu0
        %v1005 = vpop.f32.mrb[0].mxu0
        %v1006 = vadd.f32 0.0, %v1005
        %v1007 = vpop.f32.mrb[0].mxu0
        %1008 = vmatprep.mubr.bf16.mxu0 0
        %1009 = vmatmul.mubr.bf16.gmra.mrb[0].mxu0 %v966
        %v1010 = vpop.f32.mrb[0].mxu0
        %v1011 = vadd.f32 0.0, %v1010
        %v1012 = vpop.f32.mrb[0].mxu0
        %v1013 = vpop.f32.mrb[0].mxu0
        %v1014 = vadd.f32 0.0, %v1013
        %v1015 = vpop.f32.mrb[0].mxu0
        %1016 = vdwg.mxu0
        %v1021 = vunpack.c.l.b16 %v924
        %v1022 = vunpack.c.l.b16 %v925
        %v1023 = vunpack.c.l.b16 %v926
        %v1024 = vunpack.c.l.b16 %v927
        %v1025 = vpack.c.b16 %v1022, %v1021
        %v1026 = vpack.c.b16 %v1024, %v1023
        %v1028 = vsel %vm961, %v1025, 0
        %v1031 = vsel %vm961, %v1026, 0
        %1033 = vmatprep.subr.bf16.mxu0 0
        %1034 = vmatpush1.bf16.msra.mxu0 %v922
        %1035 = vmatprep.subr.bf16.mxu0 0
        %1036 = vmatpush1.bf16.msra.mxu0 %v923
        %1037 = vmatprep.subr.bf16.mxu0 0
        %1038 = vmatpush1.bf16.msra.mxu0 0
        %1039 = vmatprep.subr.bf16.mxu0 0
        %1040 = vmatpush1.bf16.msra.mxu0 0
        %1041 = vmatprep.subr.bf16.mxu0 0
        %1042 = vmatpush1.bf16.msra.mxu0 0
        %1043 = vmatprep.subr.bf16.mxu0 0
        %1044 = vmatpush1.bf16.msra.mxu0 0
        %1045 = vmatprep.subr.bf16.mxu0 0
        %1046 = vmatpush1.bf16.msra.mxu0 0
        %1047 = vmatprep.subr.bf16.mxu0 0
        %1048 = vmatpush1.bf16.msra.mxu0 0
        %1049 = vmatprep.subr.bf16.mxu0 0
        %1050 = vmatpush1.bf16.msra.mxu0 0
        %1051 = vmatprep.subr.bf16.mxu0 0
        %1052 = vmatpush1.bf16.msra.mxu0 0
        %1053 = vmatprep.subr.bf16.mxu0 0
        %1054 = vmatpush1.bf16.msra.mxu0 0
        %1055 = vmatprep.subr.bf16.mxu0 0
        %1056 = vmatpush1.bf16.msra.mxu0 0
        %1057 = vmatprep.subr.bf16.mxu0 0
        %1058 = vmatpush1.bf16.msra.mxu0 0
        %1059 = vmatprep.subr.bf16.mxu0 0
        %1060 = vmatpush1.bf16.msra.mxu0 0
        %1061 = vmatprep.subr.bf16.mxu0 0
        %1062 = vmatpush1.bf16.msra.mxu0 0
        %1063 = vmatprep.subr.bf16.mxu0 0
        %1064 = vmatpush1.bf16.msra.mxu0 0
        %1065 = vmatprep.mubr.bf16.mxu0 0
        %1066 = vmatmul.mubr.bf16.gmra.mrb[0].mxu0 %v1028
        %v1067 = vpop.f32.mrb[0].mxu0
        %v1068 = vadd.f32 %v1003, %v1067
        %v1069 = vpop.f32.mrb[0].mxu0
        %v1070 = vpop.f32.mrb[0].mxu0
        %v1071 = vadd.f32 %v1006, %v1070
        %v1072 = vpop.f32.mrb[0].mxu0
        %1073 = vmatprep.mubr.bf16.mxu0 0
        %1074 = vmatmul.mubr.bf16.gmra.mrb[0].mxu0 %v1031
        %v1075 = vpop.f32.mrb[0].mxu0
        %v1076 = vadd.f32 %v1011, %v1075
        %v1077 = vpop.f32.mrb[0].mxu0
        %v1078 = vpop.f32.mrb[0].mxu0
        %v1079 = vadd.f32 %v1014, %v1078
        %v1080 = vpop.f32.mrb[0].mxu0
        %1081 = vdwg.mxu0
        %v1082 = vpack.c.bf16 %v899, %v898
        %v1083 = vpack.c.bf16 %v901, %v900
        %s1084 = scalar_lea.vmem %s6, 32
        %v1085 = vld [vmem:[%s1084] sm:$0xf]
        %v1086 = vld [vmem:[%s1084 + $0x4] sm:$0xf]
        %v1087 = vld [vmem:[%s1084 + $0x8] sm:$0xf]
        %v1088 = vld [vmem:[%s1084 + $0xc] sm:$0xf]
        %v1093 = vunpack.c.l.b16 %v1085
        %v1094 = vunpack.c.l.b16 %v1086
        %v1095 = vunpack.c.l.b16 %v1087
        %v1096 = vunpack.c.l.b16 %v1088
        %v1097 = vpack.c.b16 %v1094, %v1093
        %v1098 = vpack.c.b16 %v1096, %v1095
        %v1100 = vsel %vm961, %v1097, 0
        %v1103 = vsel %vm961, %v1098, 0
        %1105 = vmatprep.subr.bf16.mxu0 0
        %1106 = vmatpush1.bf16.msra.mxu0 %v1082
        %1107 = vmatprep.subr.bf16.mxu0 0
        %1108 = vmatpush1.bf16.msra.mxu0 %v1083
        %1109 = vmatprep.subr.bf16.mxu0 0
        %1110 = vmatpush1.bf16.msra.mxu0 0
        %1111 = vmatprep.subr.bf16.mxu0 0
        %1112 = vmatpush1.bf16.msra.mxu0 0
        %1113 = vmatprep.subr.bf16.mxu0 0
        %1114 = vmatpush1.bf16.msra.mxu0 0
        %1115 = vmatprep.subr.bf16.mxu0 0
        %1116 = vmatpush1.bf16.msra.mxu0 0
        %1117 = vmatprep.subr.bf16.mxu0 0
        %1118 = vmatpush1.bf16.msra.mxu0 0
        %1119 = vmatprep.subr.bf16.mxu0 0
        %1120 = vmatpush1.bf16.msra.mxu0 0
        %1121 = vmatprep.subr.bf16.mxu0 0
        %1122 = vmatpush1.bf16.msra.mxu0 0
        %1123 = vmatprep.subr.bf16.mxu0 0
        %1124 = vmatpush1.bf16.msra.mxu0 0
        %1125 = vmatprep.subr.bf16.mxu0 0
        %1126 = vmatpush1.bf16.msra.mxu0 0
        %1127 = vmatprep.subr.bf16.mxu0 0
        %1128 = vmatpush1.bf16.msra.mxu0 0
        %1129 = vmatprep.subr.bf16.mxu0 0
        %1130 = vmatpush1.bf16.msra.mxu0 0
        %1131 = vmatprep.subr.bf16.mxu0 0
        %1132 = vmatpush1.bf16.msra.mxu0 0
        %1133 = vmatprep.subr.bf16.mxu0 0
        %1134 = vmatpush1.bf16.msra.mxu0 0
        %1135 = vmatprep.subr.bf16.mxu0 0
        %1136 = vmatpush1.bf16.msra.mxu0 0
        %1137 = vmatprep.mubr.bf16.mxu0 0
        %1138 = vmatmul.mubr.bf16.gmra.mrb[0].mxu0 %v1100
        %v1139 = vpop.f32.mrb[0].mxu0
        %v1140 = vadd.f32 0.0, %v1139
        %v1141 = vpop.f32.mrb[0].mxu0
        %v1142 = vpop.f32.mrb[0].mxu0
        %v1143 = vadd.f32 0.0, %v1142
        %v1144 = vpop.f32.mrb[0].mxu0
        %1145 = vmatprep.mubr.bf16.mxu0 0
        %1146 = vmatmul.mubr.bf16.gmra.mrb[0].mxu0 %v1103
        %v1147 = vpop.f32.mrb[0].mxu0
        %v1148 = vadd.f32 0.0, %v1147
        %v1149 = vpop.f32.mrb[0].mxu0
        %v1150 = vpop.f32.mrb[0].mxu0
        %v1151 = vadd.f32 0.0, %v1150
        %v1152 = vpop.f32.mrb[0].mxu0
        %1153 = vdwg.mxu0
        %v1154 = vadd.f32 %v1068, %v1140
        %v1155 = vadd.f32 %v1071, %v1143
        %v1156 = vadd.f32 %v1076, %v1148
        %v1157 = vadd.f32 %v1079, %v1151
        %v1158 = vld [vmem:[%s7] sm:$0xff]
        %v1159 = vld [vmem:[%s7 + $0x8] sm:$0xff]
        %v1160 = vld [vmem:[%s7 + $0x10] sm:$0xff]
        %v1161 = vld [vmem:[%s7 + $0x18] sm:$0xff]
        %1163 = vset.pattern.permute.xlu0 0
        %1164 = vperm.xlu0 %1163, %v1158
        %v1165 = vpop.permute.xlu0 %1164
        %1168 = vset.pattern.permute.xlu0 0
        %1169 = vperm.xlu0 %1168, %v1159
        %v1170 = vpop.permute.xlu0 %1169
        %1173 = vset.pattern.permute.xlu0 0
        %1174 = vperm.xlu0 %1173, %v1160
        %v1175 = vpop.permute.xlu0 %1174
        %1178 = vset.pattern.permute.xlu0 0
        %1179 = vperm.xlu0 %1178, %v1161
        %v1180 = vpop.permute.xlu0 %1179
        %v1182 = vadd.f32 %v1154, %v1165
        %v1183 = vadd.f32 %v1155, %v1170
        %v1184 = vadd.f32 %v1156, %v1175
        %v1185 = vadd.f32 %v1157, %v1180
        %v1186 = vmax.f32 %v1182, 0.0
        %v1187 = vmax.f32 %v1183, 0.0
        %v1188 = vmax.f32 %v1184, 0.0
        %v1189 = vmax.f32 %v1185, 0.0
        %vm1190 = vcmp.lt.s32.totalorder %v522, 13
        %v1191 = vsel %vm1190, %v1186, 0.0
        %v1192 = vsel %vm1190, %v1187, 0.0
        %v1193 = vsel %vm1190, %v1188, 0.0
        %v1194 = vsel %vm1190, %v1189, 0.0
        %1195 = vst [vmem:[%s320] sm:$0xff] %v1191
        %1196 = vst [vmem:[%s320 + $0x8] sm:$0xff] %v1192
        %1197 = vst [vmem:[%s320 + $0x10] sm:$0xff] %v1193
        %1198 = vst [vmem:[%s320 + $0x18] sm:$0xff] %v1194
        %s1199 = sand.u32 %s206, 1
        %s1200 = scalar_lea.sflag [#allocation4], %s1199
        %s1201 = sand.u32 %s206, 1
        %s1202 = smul.addr %s1201, 32
        %s1203 = scalar_lea.vmem [#allocation5], %s1202
        // Predicated region
        $region57: #{tpu_custom_call.1} parent=51 // pred_check
          %p1204 = pneg %p216
        $region58: #{tpu_custom_call.1} parent=51 // pred_check_branch
          %1206 = sbr.rel (%p1204) target = $region60
        $region59: #{tpu_custom_call.1} parent=51 // pred_region
          %s1208 = ssub.s32 512, 512
          %1209 = vsyncadd %s1200, %s1208
          %s1210 = smul.addr %s25, 4
          %s1211 = smul.addr %s1210, 128
          %s1212 = scalar_lea.hbm %s8, %s1211
          %s1213 = sshll.u32 %s1203, 4
          %s1214 = int_to_ptr.vmem [resolvable:$true] %s1213
          %1219 = dma.vmem_to_hbm [thread:$0]  %s1214, 512, %s1212, %s1200, 128, 128, 8
        $region60: #{tpu_custom_call.1} parent=51 // pred_fallthru
          _
      $region52: #{tpu_custom_call.1} parent=5 // pred_fallthru
        _
      %p1220 = scmp.le.s32.totalorder 2, %s20
      // Predicated region
      $region61: #{tpu_custom_call.1} parent=5 // pred_check
        %p1221 = pneg %p1220
      $region62: #{tpu_custom_call.1} parent=5 // pred_check_branch
        %1223 = sbr.rel (%p1221) target = $region64
      $region63: #{tpu_custom_call.1} parent=5 // pred_region
        %s1224 = ssub.s32 %s20, 2
        // Predicated region
        $region65: #{tpu_custom_call.1} parent=63 // pred_check
          %p1225 = pneg %p222
        $region66: #{tpu_custom_call.1} parent=63 // pred_check_branch
          %1227 = sbr.rel (%p1225) target = $region68
        $region67: #{tpu_custom_call.1} parent=63 // pred_region
          %s1228 = sand.u32 %s207, 1
          %s1229 = scalar_lea.sflag [#allocation4], %s1228
          %s1230 = sand.u32 %s207, 1
          %s1231 = smul.addr %s1230, 32
          %s1232 = scalar_lea.vmem [#allocation5], %s1231
          %1233 = dma.done %s1229, 512
        $region68: #{tpu_custom_call.1} parent=63 // pred_fallthru
          _
      $region64: #{tpu_custom_call.1} parent=5 // pred_fallthru
        _
    $region6: #{tpu_custom_call.1} parent=1 // loop_footer
      %s24 = sadd.s32 1, %s20
    $region7: #{tpu_custom_call.1} parent=1 // loop_footer_branch
      %19 = sbr.rel target = $region3
    $region8: #{tpu_custom_call.1} parent=1 // loop_exit
      _
    %1234 = vsyncpa [#allocation3], 1
    %s1235 = scalar_lea.sflag [#allocation3], 1
    %1236 = vsyncpa %s1235, 1
    %1237 = vsyncpa [#allocation4], 1
    %s1238 = scalar_lea.sflag [#allocation4], 1
    %1239 = vsyncpa %s1238, 1

</llo_original>
